<compile_context>
chip_gen: v6e
topology: v6e:2x2x1
jax: 0.10.0
libtpu: 0.0.40
codegen_flags: <defaults>
</compile_context>

<pallas_src>
import functools

import jax
import jax.numpy as jnp
from jax.experimental import pallas as pl
from jax.experimental.pallas import tpu as pltpu

_LANE = 128
_HALO = 8  # zero rows appended below the sorted sequence (supports kernel <= 17)
_VMEM = pl.BlockSpec(memory_space=pltpu.MemorySpace.VMEM)


def _round_up(x, m):
    return ((x + m - 1) // m) * m


# ------------------------------ fused kernel ------------------------------- #

def _nlgnn_kernel(a_ref, x_ref, w_ref, b_ref, o_ref, *,
                  n_layers, ksize, n_real, n_sorted):
    """Whole NLGNN forward on one VMEM-resident block.

    a_ref : (N, N)          normalized adjacency
    x_ref : (N, 128)        node features, lane-padded
    w_ref : (n_w, 128, 128) stacked weights:
              [0:L]            GCN layer weights
              [L]              proj weight (single column tiled across lanes)
              [L+1 : L+1+k]    conv1d taps   (tap t = torch_w[:, :, t].T)
              [L+1+k : L+1+2k] conv1d_2 taps
              [L+1+2k]         lin weight, h1 half
              [L+2+2k]         lin weight, h2 half
    b_ref : (n_b, 1, 128)   stacked biases: [0:L] GCN, [L] proj,
              [L+1] conv1, [L+2] conv2, [L+3] lin
    o_ref : (N, 128)        output rows in original node order (lane-dense)
    """
    pad = (ksize - 1) // 2
    a = a_ref[...]

    # ---- GCN stack (ReLU on all but the last layer; dropout = identity) ----
    h = x_ref[...]
    for i in range(n_layers):
        hw = jnp.dot(h, w_ref[i], preferred_element_type=jnp.float32)
        h = jnp.dot(a, hw, preferred_element_type=jnp.float32) + b_ref[i]
        if i < n_layers - 1:
            h = jnp.maximum(h, 0.0)
    h1 = h                                                     # (N, 128)

    # ---- node scores; proj weight is lane-tiled so every lane of row i = g_i ----
    g_bcast = (jnp.dot(h1, w_ref[n_layers], preferred_element_type=jnp.float32)
               + b_ref[n_layers])                              # (N, 128)
    gi = g_bcast[:, :n_real]                                   # (N, N): [i, j] = g_i

    # ---- stable ascending rank (matches jnp.argsort / torch.sort order) ----
    ii = jax.lax.broadcasted_iota(jnp.int32, (n_real, n_real), 0)
    jj = jax.lax.broadcasted_iota(jnp.int32, (n_real, n_real), 1)
    gj = jnp.sum(jnp.where(ii == jj, gi, 0.0), axis=0, keepdims=True)   # (1,N): [0,j] = g_j
    j_before_i = (gj < gi) | ((gj == gi) & (jj < ii))
    i_before_j = (gi < gj) | ((gi == gj) & (ii < jj))
    rank_i = jnp.sum(j_before_i.astype(jnp.float32), axis=1,
                     keepdims=True).astype(jnp.int32)          # (N, 1)
    rank_j = jnp.sum(i_before_j.astype(jnp.float32), axis=0,
                     keepdims=True).astype(jnp.int32)          # (1, N)

    # ---- one-hot permutations; rows/cols beyond n_real stay all-zero ----
    p_sort = jnp.where(
        jax.lax.broadcasted_iota(jnp.int32, (n_sorted, n_real), 0) == rank_j,
        1.0, 0.0)                                              # (n_sorted, N)
    p_unsort = jnp.where(
        jax.lax.broadcasted_iota(jnp.int32, (n_real, n_sorted), 1) == rank_i,
        1.0, 0.0)                                              # (N, n_sorted)

    # ---- sort g*h1; halo rows [n_real:n_sorted) come out as exact zeros ----
    xs = jnp.dot(p_sort, g_bcast * h1, preferred_element_type=jnp.float32)

    # ---- conv1d -> ReLU -> conv1d as shifted matmuls; rolls wrap the zero
    #      halo in, so no per-tap masking is needed ----
    def conv(xin, w_base, b_idx):
        # Center tap (no shift) initializes the accumulator.
        acc = jnp.dot(xin, w_ref[w_base + pad], preferred_element_type=jnp.float32)
        for t in range(ksize):
            d = t - pad
            if d == 0:
                continue
            shifted = pltpu.roll(xin, shift=(-d) % n_sorted, axis=0)  # row n -> xin[n + d]
            acc = acc + jnp.dot(shifted, w_ref[w_base + t],
                                preferred_element_type=jnp.float32)
        return acc + b_ref[b_idx]
        # TODO(synk): if MXU-push-bound, pack the k taps into unused lanes and
        # fold each conv into a single 128x128 matmul.

    y = jnp.maximum(conv(xs, n_layers + 1, n_layers + 1), 0.0)
    # conv1 put bias/spill values in the halo rows; re-zero them so conv2's
    # boundary taps still see zero padding of the length-N sequence.
    in_range = jax.lax.broadcasted_iota(jnp.int32, (n_sorted, _LANE), 0) < n_real
    y = jnp.where(in_range, y, 0.0)
    y = conv(y, n_layers + 1 + ksize, n_layers + 2)

    # ---- un-sort the conv branch and fuse the final Linear over [h1 | h2] ----
    h2 = jnp.dot(p_unsort, y, preferred_element_type=jnp.float32)       # (N, 128)
    o_ref[...] = (
        jnp.dot(h1, w_ref[n_layers + 1 + 2 * ksize], preferred_element_type=jnp.float32)
        + jnp.dot(h2, w_ref[n_layers + 2 + 2 * ksize], preferred_element_type=jnp.float32)
        + b_ref[n_layers + 3])


# --------------------------- parameter plumbing ----------------------------- #

def _pad_to(x, shape):
    return jnp.pad(x, [(0, s - d) for s, d in zip(shape, x.shape)])


def prepare_padded_params(params, kernel_size):
    """Stack all weights / biases into two lane-dense arrays (4 DMAs total)."""
    c = params["lin_b"].shape[0]
    for w, _ in params["gcn"]:
        assert max(w.shape) <= _LANE, "TODO(synk): tile feature dims > 128"
    ws, bs = [], []
    for w, b in params["gcn"]:
        ws.append(_pad_to(w, (_LANE, _LANE)))
        bs.append(_pad_to(b.reshape(1, -1), (1, _LANE)))
    # proj: broadcast the single output column across all lanes so the score is
    # already lane-broadcast inside the kernel.
    ws.append(jnp.tile(_pad_to(params["proj_w"], (_LANE, 1)), (1, _LANE)))
    bs.append(jnp.full((1, _LANE), params["proj_b"][0], jnp.float32))
    conv_biases = []
    for name in ("conv1", "conv2"):
        w = params[name + "_w"]                    # torch layout (C_out, C_in, k)
        taps = jnp.transpose(w, (2, 1, 0))         # (k, C_in, C_out)
        for t in range(kernel_size):
            ws.append(_pad_to(taps[t], (_LANE, _LANE)))
        conv_biases.append(_pad_to(params[name + "_b"].reshape(1, -1), (1, _LANE)))
    ws.append(_pad_to(params["lin_w"][:c], (_LANE, _LANE)))
    ws.append(_pad_to(params["lin_w"][c:], (_LANE, _LANE)))
    bs.extend(conv_biases)
    bs.append(_pad_to(params["lin_b"].reshape(1, -1), (1, _LANE)))
    return {"w": jnp.stack(ws), "b": jnp.stack(bs)}


# ------------------------------ model forward ------------------------------- #

def nlgnn_forward(x, a_hat, padded_params, *, kernel_size, num_cls):
    n = x.shape[0]
    pp = padded_params
    n_layers = pp["w"].shape[0] - 3 - 2 * kernel_size
    assert (kernel_size - 1) // 2 <= _HALO
    n_sorted = _round_up(n + _HALO, 8)
    x_pad = _pad_to(x, (n, _LANE))

    out = pl.pallas_call(
        functools.partial(_nlgnn_kernel, n_layers=n_layers, ksize=kernel_size,
                          n_real=n, n_sorted=n_sorted),
        out_shape=jax.ShapeDtypeStruct((n, _LANE), jnp.float32),
        in_specs=[_VMEM, _VMEM, _VMEM, _VMEM],
        out_specs=_VMEM,
    )(a_hat, x_pad, pp["w"], pp["b"])
    return out[:, :num_cls]


# ----------------------------- parameter init ------------------------------- #

def init_params(key, num_feats, hid_dim, num_cls, n_gnn_layers, kernel_size):
    params = {"gcn": []}
    keys = jax.random.split(key, 2 * n_gnn_layers + 10)
    ki = 0
    in_dim = num_feats
    for i in range(n_gnn_layers):
        out_dim = num_cls if i == n_gnn_layers - 1 else hid_dim
        w = jax.random.normal(keys[ki], (in_dim, out_dim), jnp.float32) * 0.1
        b = jax.random.normal(keys[ki + 1], (out_dim,), jnp.float32) * 0.01
        params["gcn"].append((w, b))
        in_dim = out_dim
        ki += 2
    c = num_cls
    params["proj_w"] = jax.random.normal(keys[ki], (c, 1), jnp.float32) * 0.1
    params["proj_b"] = jax.random.normal(keys[ki + 1], (1,), jnp.float32) * 0.01
    params["conv1_w"] = jax.random.normal(keys[ki + 2], (c, c, kernel_size),
                                          jnp.float32) * 0.1
    params["conv1_b"] = jax.random.normal(keys[ki + 3], (c,), jnp.float32) * 0.01
    params["conv2_w"] = jax.random.normal(keys[ki + 4], (c, c, kernel_size),
                                          jnp.float32) * 0.1
    params["conv2_b"] = jax.random.normal(keys[ki + 5], (c,), jnp.float32) * 0.01
    params["lin_w"] = jax.random.normal(keys[ki + 6], (2 * c, c), jnp.float32) * 0.1
    params["lin_b"] = jax.random.normal(keys[ki + 7], (c,), jnp.float32) * 0.01
    return params


def build_normalized_adjacency(edge_index, n):
    """Dense GCN normalization: D^{-1/2} (A_sym + I) D^{-1/2}."""
    src, dst = edge_index[0], edge_index[1]
    a = jnp.zeros((n, n), jnp.float32).at[dst, src].set(1.0)
    a = jnp.maximum(a, a.T)                          # symmetrize
    a = a.at[jnp.arange(n), jnp.arange(n)].set(1.0)  # self loops
    deg = a.sum(axis=1)
    dinv = jax.lax.rsqrt(deg)
    return dinv[:, None] * a * dinv[None, :]


# --------------------------- pure-JAX reference ------------------------------ #

def nlgnn_reference(x, a_hat, params, kernel_size):
    h = x
    n_layers = len(params["gcn"])
    for i, (w, b) in enumerate(params["gcn"]):
        h = a_hat @ (h @ w) + b
        if i < n_layers - 1:
            h = jax.nn.relu(h)
    h1 = h
    g = h1 @ params["proj_w"] + params["proj_b"]          # (N, 1)
    sorted_idx = jnp.argsort(g[:, 0])
    inverse_idx = jnp.argsort(sorted_idx)
    sorted_x = g[sorted_idx] * h1[sorted_idx]             # (N, C)
    seq = sorted_x.T[None]                                # (1, C, N)
    pad = (kernel_size - 1) // 2
    dn = ("NCH", "OIH", "NCH")
    y = jax.lax.conv_general_dilated(seq, params["conv1_w"], (1,), [(pad, pad)],
                                     dimension_numbers=dn)
    y = jax.nn.relu(y + params["conv1_b"][None, :, None])
    y = jax.lax.conv_general_dilated(y, params["conv2_w"], (1,), [(pad, pad)],
                                     dimension_numbers=dn)
    y = y + params["conv2_b"][None, :, None]
    h2 = y[0].T[inverse_idx]
    return jnp.concatenate([h1, h2], axis=1) @ params["lin_w"] + params["lin_b"]


# ---------------------------------- main ------------------------------------ #

if __name__ == "__main__":
    # config: n_gnn_layers=3, num_feats=16, gnn_hid_dim=32, num_cls=8, kernel=3
    N, NUM_FEATS, HID_DIM, NUM_CLS = 64, 16, 32, 8
    N_GNN_LAYERS, KERNEL = 3, 3
    N_EDGES = 256

    key = jax.random.PRNGKey(0)
    k_x, k_src, k_dst, k_par = jax.random.split(key, 4)

    x = jax.random.normal(k_x, (N, NUM_FEATS), jnp.float32)
    edge_index = jnp.stack([
        jax.random.randint(k_src, (N_EDGES,), 0, N),
        jax.random.randint(k_dst, (N_EDGES,), 0, N),
    ])
    a_hat = build_normalized_adjacency(edge_index, N)

    params = init_params(k_par, NUM_FEATS, HID_DIM, NUM_CLS, N_GNN_LAYERS, KERNEL)
    padded = prepare_padded_params(params, KERNEL)

    fwd = jax.jit(functools.partial(nlgnn_forward, kernel_size=KERNEL,
                                    num_cls=NUM_CLS))
    out = jax.block_until_ready(fwd(x, a_hat, padded))

    assert out.shape == (N, NUM_CLS), out.shape
    assert bool(jnp.all(jnp.isfinite(out)))

    ref = nlgnn_reference(x, a_hat, params, KERNEL)
    max_err = float(jnp.max(jnp.abs(out - ref)))
    assert bool(jnp.allclose(out, ref, rtol=1e-2, atol=1e-3)), max_err

    print("KERNEL_OK")
</pallas_src>

<mosaic_0001>
module attributes {stable_mosaic.version = 11 : i64} {
  func.func @_nlgnn_kernel(%arg0: memref<64x64xf32, #tpu.memory_space<vmem>>, %arg1: memref<64x128xf32, #tpu.memory_space<vmem>>, %arg2: memref<12x128x128xf32, #tpu.memory_space<vmem>>, %arg3: memref<7x1x128xf32, #tpu.memory_space<vmem>>, %arg4: memref<64x128xf32, #tpu.memory_space<vmem>>) attributes {dimension_semantics = [], scalar_prefetch = 0 : i64, scratch_operands = 0 : i64, tpu.core_type = #tpu.core_type<tc>} {
    %c0 = arith.constant 0 : index
    %c0_0 = arith.constant 0 : index
    %0 = vector.load %arg0[%c0, %c0_0] : memref<64x64xf32, #tpu.memory_space<vmem>>, vector<64x64xf32>
    %c0_1 = arith.constant 0 : index
    %c0_2 = arith.constant 0 : index
    %1 = vector.load %arg1[%c0_1, %c0_2] : memref<64x128xf32, #tpu.memory_space<vmem>>, vector<64x128xf32>
    %c0_3 = arith.constant 0 : index
    %c0_4 = arith.constant 0 : index
    %c0_5 = arith.constant 0 : index
    %2 = vector.load %arg2[%c0_3, %c0_4, %c0_5] : memref<12x128x128xf32, #tpu.memory_space<vmem>>, vector<1x128x128xf32>
    %3 = vector.shape_cast %2 : vector<1x128x128xf32> to vector<128x128xf32>
    %cst = arith.constant dense<0.000000e+00> : vector<64x128xf32>
    %4 = tpu.matmul %1, %3, %cst {dimension_numbers = #tpu.dot_dimension_numbers<[1], [0], [0], [1], [0, 0, 1, 1], [], []>} : vector<64x128xf32>, vector<128x128xf32>, vector<64x128xf32> -> vector<64x128xf32>
    %cst_6 = arith.constant dense<0.000000e+00> : vector<64x128xf32>
    %5 = tpu.matmul %0, %4, %cst_6 {dimension_numbers = #tpu.dot_dimension_numbers<[1], [0], [0], [1], [0, 0, 1, 1], [], []>} : vector<64x64xf32>, vector<64x128xf32>, vector<64x128xf32> -> vector<64x128xf32>
    %c0_7 = arith.constant 0 : index
    %c0_8 = arith.constant 0 : index
    %c0_9 = arith.constant 0 : index
    %6 = vector.load %arg3[%c0_7, %c0_8, %c0_9] : memref<7x1x128xf32, #tpu.memory_space<vmem>>, vector<1x1x128xf32>
    %7 = vector.shape_cast %6 : vector<1x1x128xf32> to vector<1x128xf32>
    %8 = vector.broadcast %7 : vector<1x128xf32> to vector<64x128xf32>
    %9 = arith.addf %5, %8 : vector<64x128xf32>
    %cst_10 = arith.constant 0.000000e+00 : f32
    %10 = vector.broadcast %cst_10 : f32 to vector<64x128xf32>
    %11 = arith.maximumf %9, %10 : vector<64x128xf32>
    %c1 = arith.constant 1 : index
    %c0_11 = arith.constant 0 : index
    %c0_12 = arith.constant 0 : index
    %12 = vector.load %arg2[%c1, %c0_11, %c0_12] : memref<12x128x128xf32, #tpu.memory_space<vmem>>, vector<1x128x128xf32>
    %13 = vector.shape_cast %12 : vector<1x128x128xf32> to vector<128x128xf32>
    %cst_13 = arith.constant dense<0.000000e+00> : vector<64x128xf32>
    %14 = tpu.matmul %11, %13, %cst_13 {dimension_numbers = #tpu.dot_dimension_numbers<[1], [0], [0], [1], [0, 0, 1, 1], [], []>} : vector<64x128xf32>, vector<128x128xf32>, vector<64x128xf32> -> vector<64x128xf32>
    %cst_14 = arith.constant dense<0.000000e+00> : vector<64x128xf32>
    %15 = tpu.matmul %0, %14, %cst_14 {dimension_numbers = #tpu.dot_dimension_numbers<[1], [0], [0], [1], [0, 0, 1, 1], [], []>} : vector<64x64xf32>, vector<64x128xf32>, vector<64x128xf32> -> vector<64x128xf32>
    %c1_15 = arith.constant 1 : index
    %c0_16 = arith.constant 0 : index
    %c0_17 = arith.constant 0 : index
    %16 = vector.load %arg3[%c1_15, %c0_16, %c0_17] : memref<7x1x128xf32, #tpu.memory_space<vmem>>, vector<1x1x128xf32>
    %17 = vector.shape_cast %16 : vector<1x1x128xf32> to vector<1x128xf32>
    %18 = vector.broadcast %17 : vector<1x128xf32> to vector<64x128xf32>
    %19 = arith.addf %15, %18 : vector<64x128xf32>
    %cst_18 = arith.constant 0.000000e+00 : f32
    %20 = vector.broadcast %cst_18 : f32 to vector<64x128xf32>
    %21 = arith.maximumf %19, %20 : vector<64x128xf32>
    %c2 = arith.constant 2 : index
    %c0_19 = arith.constant 0 : index
    %c0_20 = arith.constant 0 : index
    %22 = vector.load %arg2[%c2, %c0_19, %c0_20] : memref<12x128x128xf32, #tpu.memory_space<vmem>>, vector<1x128x128xf32>
    %23 = vector.shape_cast %22 : vector<1x128x128xf32> to vector<128x128xf32>
    %cst_21 = arith.constant dense<0.000000e+00> : vector<64x128xf32>
    %24 = tpu.matmul %21, %23, %cst_21 {dimension_numbers = #tpu.dot_dimension_numbers<[1], [0], [0], [1], [0, 0, 1, 1], [], []>} : vector<64x128xf32>, vector<128x128xf32>, vector<64x128xf32> -> vector<64x128xf32>
    %cst_22 = arith.constant dense<0.000000e+00> : vector<64x128xf32>
    %25 = tpu.matmul %0, %24, %cst_22 {dimension_numbers = #tpu.dot_dimension_numbers<[1], [0], [0], [1], [0, 0, 1, 1], [], []>} : vector<64x64xf32>, vector<64x128xf32>, vector<64x128xf32> -> vector<64x128xf32>
    %c2_23 = arith.constant 2 : index
    %c0_24 = arith.constant 0 : index
    %c0_25 = arith.constant 0 : index
    %26 = vector.load %arg3[%c2_23, %c0_24, %c0_25] : memref<7x1x128xf32, #tpu.memory_space<vmem>>, vector<1x1x128xf32>
    %27 = vector.shape_cast %26 : vector<1x1x128xf32> to vector<1x128xf32>
    %28 = vector.broadcast %27 : vector<1x128xf32> to vector<64x128xf32>
    %29 = arith.addf %25, %28 : vector<64x128xf32>
    %c3 = arith.constant 3 : index
    %c0_26 = arith.constant 0 : index
    %c0_27 = arith.constant 0 : index
    %30 = vector.load %arg2[%c3, %c0_26, %c0_27] : memref<12x128x128xf32, #tpu.memory_space<vmem>>, vector<1x128x128xf32>
    %31 = vector.shape_cast %30 : vector<1x128x128xf32> to vector<128x128xf32>
    %cst_28 = arith.constant dense<0.000000e+00> : vector<64x128xf32>
    %32 = tpu.matmul %29, %31, %cst_28 {dimension_numbers = #tpu.dot_dimension_numbers<[1], [0], [0], [1], [0, 0, 1, 1], [], []>} : vector<64x128xf32>, vector<128x128xf32>, vector<64x128xf32> -> vector<64x128xf32>
    %c3_29 = arith.constant 3 : index
    %c0_30 = arith.constant 0 : index
    %c0_31 = arith.constant 0 : index
    %33 = vector.load %arg3[%c3_29, %c0_30, %c0_31] : memref<7x1x128xf32, #tpu.memory_space<vmem>>, vector<1x1x128xf32>
    %34 = vector.shape_cast %33 : vector<1x1x128xf32> to vector<1x128xf32>
    %35 = vector.broadcast %34 : vector<1x128xf32> to vector<64x128xf32>
    %36 = arith.addf %32, %35 : vector<64x128xf32>
    %37 = vector.extract_strided_slice %36 {offsets = [0, 0], sizes = [64, 64], strides = [1, 1]} : vector<64x128xf32> to vector<64x64xf32>
    %38 = tpu.iota {dimensions = array<i32: 0>} : vector<64x64xi32>
    %39 = tpu.iota {dimensions = array<i32: 1>} : vector<64x64xi32>
    %40 = arith.cmpi eq, %38, %39 : vector<64x64xi32>
    %cst_32 = arith.constant 0.000000e+00 : f32
    %41 = vector.broadcast %cst_32 : f32 to vector<64x64xf32>
    %42 = arith.select %40, %37, %41 : vector<64x64xi1>, vector<64x64xf32>
    %cst_33 = arith.constant dense<0.000000e+00> : vector<64xf32>
    %43 = vector.multi_reduction <add>, %42, %cst_33 [0] : vector<64x64xf32> to vector<64xf32>
    %44 = vector.shape_cast %43 : vector<64xf32> to vector<1x64xf32>
    %45 = vector.broadcast %44 : vector<1x64xf32> to vector<64x64xf32>
    %46 = arith.cmpf olt, %45, %37 : vector<64x64xf32>
    %47 = vector.broadcast %44 : vector<1x64xf32> to vector<64x64xf32>
    %48 = arith.cmpf oeq, %47, %37 : vector<64x64xf32>
    %49 = arith.cmpi slt, %39, %38 : vector<64x64xi32>
    %50 = arith.andi %48, %49 : vector<64x64xi1>
    %51 = arith.ori %46, %50 : vector<64x64xi1>
    %52 = vector.broadcast %44 : vector<1x64xf32> to vector<64x64xf32>
    %53 = arith.cmpf olt, %37, %52 : vector<64x64xf32>
    %54 = vector.broadcast %44 : vector<1x64xf32> to vector<64x64xf32>
    %55 = arith.cmpf oeq, %37, %54 : vector<64x64xf32>
    %56 = arith.cmpi slt, %38, %39 : vector<64x64xi32>
    %57 = arith.andi %55, %56 : vector<64x64xi1>
    %58 = arith.ori %53, %57 : vector<64x64xi1>
    %59 = arith.extui %51 : vector<64x64xi1> to vector<64x64xi32>
    %60 = arith.sitofp %59 : vector<64x64xi32> to vector<64x64xf32>
    %cst_34 = arith.constant dense<0.000000e+00> : vector<64xf32>
    %61 = vector.multi_reduction <add>, %60, %cst_34 [1] : vector<64x64xf32> to vector<64xf32>
    %62 = vector.shape_cast %61 : vector<64xf32> to vector<64x1xf32>
    %63 = arith.fptosi %62 : vector<64x1xf32> to vector<64x1xi32>
    %64 = arith.extui %58 : vector<64x64xi1> to vector<64x64xi32>
    %65 = arith.sitofp %64 : vector<64x64xi32> to vector<64x64xf32>
    %cst_35 = arith.constant dense<0.000000e+00> : vector<64xf32>
    %66 = vector.multi_reduction <add>, %65, %cst_35 [0] : vector<64x64xf32> to vector<64xf32>
    %67 = vector.shape_cast %66 : vector<64xf32> to vector<1x64xf32>
    %68 = arith.fptosi %67 : vector<1x64xf32> to vector<1x64xi32>
    %69 = tpu.iota {dimensions = array<i32: 0>} : vector<72x64xi32>
    %70 = vector.broadcast %68 : vector<1x64xi32> to vector<72x64xi32>
    %71 = arith.cmpi eq, %69, %70 : vector<72x64xi32>
    %cst_36 = arith.constant 1.000000e+00 : f32
    %cst_37 = arith.constant 0.000000e+00 : f32
    %72 = vector.broadcast %cst_36 : f32 to vector<72x64xf32>
    %73 = vector.broadcast %cst_37 : f32 to vector<72x64xf32>
    %74 = arith.select %71, %72, %73 : vector<72x64xi1>, vector<72x64xf32>
    %75 = tpu.iota {dimensions = array<i32: 1>} : vector<64x72xi32>
    %76 = vector.broadcast %63 : vector<64x1xi32> to vector<64x72xi32>
    %77 = arith.cmpi eq, %75, %76 : vector<64x72xi32>
    %cst_38 = arith.constant 1.000000e+00 : f32
    %cst_39 = arith.constant 0.000000e+00 : f32
    %78 = vector.broadcast %cst_38 : f32 to vector<64x72xf32>
    %79 = vector.broadcast %cst_39 : f32 to vector<64x72xf32>
    %80 = arith.select %77, %78, %79 : vector<64x72xi1>, vector<64x72xf32>
    %81 = arith.mulf %36, %29 : vector<64x128xf32>
    %cst_40 = arith.constant dense<0.000000e+00> : vector<72x128xf32>
    %82 = tpu.matmul %74, %81, %cst_40 {dimension_numbers = #tpu.dot_dimension_numbers<[1], [0], [0], [1], [0, 0, 1, 1], [], []>} : vector<72x64xf32>, vector<64x128xf32>, vector<72x128xf32> -> vector<72x128xf32>
    %c5 = arith.constant 5 : index
    %c0_41 = arith.constant 0 : index
    %c0_42 = arith.constant 0 : index
    %83 = vector.load %arg2[%c5, %c0_41, %c0_42] : memref<12x128x128xf32, #tpu.memory_space<vmem>>, vector<1x128x128xf32>
    %84 = vector.shape_cast %83 : vector<1x128x128xf32> to vector<128x128xf32>
    %cst_43 = arith.constant dense<0.000000e+00> : vector<72x128xf32>
    %85 = tpu.matmul %82, %84, %cst_43 {dimension_numbers = #tpu.dot_dimension_numbers<[1], [0], [0], [1], [0, 0, 1, 1], [], []>} : vector<72x128xf32>, vector<128x128xf32>, vector<72x128xf32> -> vector<72x128xf32>
    %c1_i32 = arith.constant 1 : i32
    %86 = tpu.dynamic_rotate %82 by %c1_i32 dim 0 : vector<72x128xf32>, i32 -> vector<72x128xf32>
    %c4 = arith.constant 4 : index
    %c0_44 = arith.constant 0 : index
    %c0_45 = arith.constant 0 : index
    %87 = vector.load %arg2[%c4, %c0_44, %c0_45] : memref<12x128x128xf32, #tpu.memory_space<vmem>>, vector<1x128x128xf32>
    %88 = vector.shape_cast %87 : vector<1x128x128xf32> to vector<128x128xf32>
    %cst_46 = arith.constant dense<0.000000e+00> : vector<72x128xf32>
    %89 = tpu.matmul %86, %88, %cst_46 {dimension_numbers = #tpu.dot_dimension_numbers<[1], [0], [0], [1], [0, 0, 1, 1], [], []>} : vector<72x128xf32>, vector<128x128xf32>, vector<72x128xf32> -> vector<72x128xf32>
    %90 = arith.addf %85, %89 : vector<72x128xf32>
    %c71_i32 = arith.constant 71 : i32
    %91 = tpu.dynamic_rotate %82 by %c71_i32 dim 0 : vector<72x128xf32>, i32 -> vector<72x128xf32>
    %c6 = arith.constant 6 : index
    %c0_47 = arith.constant 0 : index
    %c0_48 = arith.constant 0 : index
    %92 = vector.load %arg2[%c6, %c0_47, %c0_48] : memref<12x128x128xf32, #tpu.memory_space<vmem>>, vector<1x128x128xf32>
    %93 = vector.shape_cast %92 : vector<1x128x128xf32> to vector<128x128xf32>
    %cst_49 = arith.constant dense<0.000000e+00> : vector<72x128xf32>
    %94 = tpu.matmul %91, %93, %cst_49 {dimension_numbers = #tpu.dot_dimension_numbers<[1], [0], [0], [1], [0, 0, 1, 1], [], []>} : vector<72x128xf32>, vector<128x128xf32>, vector<72x128xf32> -> vector<72x128xf32>
    %95 = arith.addf %90, %94 : vector<72x128xf32>
    %c4_50 = arith.constant 4 : index
    %c0_51 = arith.constant 0 : index
    %c0_52 = arith.constant 0 : index
    %96 = vector.load %arg3[%c4_50, %c0_51, %c0_52] : memref<7x1x128xf32, #tpu.memory_space<vmem>>, vector<1x1x128xf32>
    %97 = vector.shape_cast %96 : vector<1x1x128xf32> to vector<1x128xf32>
    %98 = vector.broadcast %97 : vector<1x128xf32> to vector<72x128xf32>
    %99 = arith.addf %95, %98 : vector<72x128xf32>
    %cst_53 = arith.constant 0.000000e+00 : f32
    %100 = vector.broadcast %cst_53 : f32 to vector<72x128xf32>
    %101 = arith.maximumf %99, %100 : vector<72x128xf32>
    %102 = tpu.iota {dimensions = array<i32: 0>} : vector<72x128xi32>
    %c64_i32 = arith.constant 64 : i32
    %103 = vector.broadcast %c64_i32 : i32 to vector<72x128xi32>
    %104 = arith.cmpi slt, %102, %103 : vector<72x128xi32>
    %cst_54 = arith.constant 0.000000e+00 : f32
    %105 = vector.broadcast %cst_54 : f32 to vector<72x128xf32>
    %106 = arith.select %104, %101, %105 : vector<72x128xi1>, vector<72x128xf32>
    %c8 = arith.constant 8 : index
    %c0_55 = arith.constant 0 : index
    %c0_56 = arith.constant 0 : index
    %107 = vector.load %arg2[%c8, %c0_55, %c0_56] : memref<12x128x128xf32, #tpu.memory_space<vmem>>, vector<1x128x128xf32>
    %108 = vector.shape_cast %107 : vector<1x128x128xf32> to vector<128x128xf32>
    %cst_57 = arith.constant dense<0.000000e+00> : vector<72x128xf32>
    %109 = tpu.matmul %106, %108, %cst_57 {dimension_numbers = #tpu.dot_dimension_numbers<[1], [0], [0], [1], [0, 0, 1, 1], [], []>} : vector<72x128xf32>, vector<128x128xf32>, vector<72x128xf32> -> vector<72x128xf32>
    %c1_i32_58 = arith.constant 1 : i32
    %110 = tpu.dynamic_rotate %106 by %c1_i32_58 dim 0 : vector<72x128xf32>, i32 -> vector<72x128xf32>
    %c7 = arith.constant 7 : index
    %c0_59 = arith.constant 0 : index
    %c0_60 = arith.constant 0 : index
    %111 = vector.load %arg2[%c7, %c0_59, %c0_60] : memref<12x128x128xf32, #tpu.memory_space<vmem>>, vector<1x128x128xf32>
    %112 = vector.shape_cast %111 : vector<1x128x128xf32> to vector<128x128xf32>
    %cst_61 = arith.constant dense<0.000000e+00> : vector<72x128xf32>
    %113 = tpu.matmul %110, %112, %cst_61 {dimension_numbers = #tpu.dot_dimension_numbers<[1], [0], [0], [1], [0, 0, 1, 1], [], []>} : vector<72x128xf32>, vector<128x128xf32>, vector<72x128xf32> -> vector<72x128xf32>
    %114 = arith.addf %109, %113 : vector<72x128xf32>
    %c71_i32_62 = arith.constant 71 : i32
    %115 = tpu.dynamic_rotate %106 by %c71_i32_62 dim 0 : vector<72x128xf32>, i32 -> vector<72x128xf32>
    %c9 = arith.constant 9 : index
    %c0_63 = arith.constant 0 : index
    %c0_64 = arith.constant 0 : index
    %116 = vector.load %arg2[%c9, %c0_63, %c0_64] : memref<12x128x128xf32, #tpu.memory_space<vmem>>, vector<1x128x128xf32>
    %117 = vector.shape_cast %116 : vector<1x128x128xf32> to vector<128x128xf32>
    %cst_65 = arith.constant dense<0.000000e+00> : vector<72x128xf32>
    %118 = tpu.matmul %115, %117, %cst_65 {dimension_numbers = #tpu.dot_dimension_numbers<[1], [0], [0], [1], [0, 0, 1, 1], [], []>} : vector<72x128xf32>, vector<128x128xf32>, vector<72x128xf32> -> vector<72x128xf32>
    %119 = arith.addf %114, %118 : vector<72x128xf32>
    %c5_66 = arith.constant 5 : index
    %c0_67 = arith.constant 0 : index
    %c0_68 = arith.constant 0 : index
    %120 = vector.load %arg3[%c5_66, %c0_67, %c0_68] : memref<7x1x128xf32, #tpu.memory_space<vmem>>, vector<1x1x128xf32>
    %121 = vector.shape_cast %120 : vector<1x1x128xf32> to vector<1x128xf32>
    %122 = vector.broadcast %121 : vector<1x128xf32> to vector<72x128xf32>
    %123 = arith.addf %119, %122 : vector<72x128xf32>
    %cst_69 = arith.constant dense<0.000000e+00> : vector<64x128xf32>
    %124 = tpu.matmul %80, %123, %cst_69 {dimension_numbers = #tpu.dot_dimension_numbers<[1], [0], [0], [1], [0, 0, 1, 1], [], []>} : vector<64x72xf32>, vector<72x128xf32>, vector<64x128xf32> -> vector<64x128xf32>
    %c10 = arith.constant 10 : index
    %c0_70 = arith.constant 0 : index
    %c0_71 = arith.constant 0 : index
    %125 = vector.load %arg2[%c10, %c0_70, %c0_71] : memref<12x128x128xf32, #tpu.memory_space<vmem>>, vector<1x128x128xf32>
    %126 = vector.shape_cast %125 : vector<1x128x128xf32> to vector<128x128xf32>
    %cst_72 = arith.constant dense<0.000000e+00> : vector<64x128xf32>
    %127 = tpu.matmul %29, %126, %cst_72 {dimension_numbers = #tpu.dot_dimension_numbers<[1], [0], [0], [1], [0, 0, 1, 1], [], []>} : vector<64x128xf32>, vector<128x128xf32>, vector<64x128xf32> -> vector<64x128xf32>
    %c11 = arith.constant 11 : index
    %c0_73 = arith.constant 0 : index
    %c0_74 = arith.constant 0 : index
    %128 = vector.load %arg2[%c11, %c0_73, %c0_74] : memref<12x128x128xf32, #tpu.memory_space<vmem>>, vector<1x128x128xf32>
    %129 = vector.shape_cast %128 : vector<1x128x128xf32> to vector<128x128xf32>
    %cst_75 = arith.constant dense<0.000000e+00> : vector<64x128xf32>
    %130 = tpu.matmul %124, %129, %cst_75 {dimension_numbers = #tpu.dot_dimension_numbers<[1], [0], [0], [1], [0, 0, 1, 1], [], []>} : vector<64x128xf32>, vector<128x128xf32>, vector<64x128xf32> -> vector<64x128xf32>
    %131 = arith.addf %127, %130 : vector<64x128xf32>
    %c6_76 = arith.constant 6 : index
    %c0_77 = arith.constant 0 : index
    %c0_78 = arith.constant 0 : index
    %132 = vector.load %arg3[%c6_76, %c0_77, %c0_78] : memref<7x1x128xf32, #tpu.memory_space<vmem>>, vector<1x1x128xf32>
    %133 = vector.shape_cast %132 : vector<1x1x128xf32> to vector<1x128xf32>
    %134 = vector.broadcast %133 : vector<1x128xf32> to vector<64x128xf32>
    %135 = arith.addf %131, %134 : vector<64x128xf32>
    %c0_79 = arith.constant 0 : index
    %c0_80 = arith.constant 0 : index
    %136 = vector.load %arg4[%c0_79, %c0_80] : memref<64x128xf32, #tpu.memory_space<vmem>>, vector<64x128xf32>
    tpu.vector_store %arg4[%c0_79, %c0_80], %135 {strides = array<i32>} : memref<64x128xf32, #tpu.memory_space<vmem>>, vector<64x128xf32>,
    return
  }
}

</mosaic_0001>

<llo_original>
// kernel: nlgnn_forward.1
$region0: #{nlgnn_forward.1}
  #allocation0 [shape = 'u32[]', space=smem, size = 0x4, offset = 0x4, fixed_abs, tag = 'smem constant byte address 0x4 - core index']
  #allocation1 [shape = 'u32[144,128]{1,0:T(1,128)}', space=vmem, size = 0x12000, scoped, tag = 'internal scratch']
  %s0 = inlined_call_operand.vmem [shape: f32[64,64], index: 0, kind: input, shape index: {}]
  %s1 = inlined_call_operand.vmem [shape: f32[64,128], index: 1, kind: input, shape index: {}]
  %s2 = inlined_call_operand.hbm [shape: f32[12,128,128], index: 2, kind: input, shape index: {}]
  %s3 = inlined_call_operand.vmem [shape: f32[7,1,128], index: 3, kind: input, shape index: {}]
  %s4 = inlined_call_operand.vmem [shape: f32[64,128], index: 4, kind: output, shape index: {}]
  %s5 = sld [smem:[#allocation0]]
  $region30: #{nlgnn_forward.1} parent=0
    _
  %s7 = ssub.s32 1, %s5
  %s8 = scalar_select 0, %s7, %s5
  $region1: #{nlgnn_forward.1} parent=0
    #allocation2 [shape = 'u8[786432]{0}', space=vmem, size = 0xc0000, scoped, tag = 'input window, operand 2, single buffered']
    #allocation3 [shape = 's32[1]{0}', space=sflag, size = 0x4, scoped, tag = 'scoped memory for nlgnn_forward.1']
    %9 = vsyncpa [#allocation3], 0
    // Predicated region
    $region2: #{nlgnn_forward.1} parent=1 // pred_check
      _
    $region3: #{nlgnn_forward.1} parent=1 // pred_check_branch
      %11 = sbr.rel (0) target = $region5
    $region4: #{nlgnn_forward.1} parent=1 // pred_region
      _
    $region5: #{nlgnn_forward.1} parent=1 // pred_fallthru
      _
    // Predicated region
    $region6: #{nlgnn_forward.1} parent=1 // pred_check
      _
    $region7: #{nlgnn_forward.1} parent=1 // pred_check_branch
      %13 = sbr.rel (0) target = $region9
    $region8: #{nlgnn_forward.1} parent=1 // pred_region
      _
    $region9: #{nlgnn_forward.1} parent=1 // pred_fallthru
      _
    // Predicated region
    $region10: #{nlgnn_forward.1} parent=1 // pred_check
      _
    $region11: #{nlgnn_forward.1} parent=1 // pred_check_branch
      %15 = sbr.rel (0) target = $region13
    $region12: #{nlgnn_forward.1} parent=1 // pred_region
      %s17 = ssub.s32 24576, 24576
      %18 = vsyncadd [#allocation3], %s17
      %s19 = sshll.u32 [#allocation2], 4
      %s20 = int_to_ptr.vmem [resolvable:$true] %s19
      %25 = dma.hbm_to_vmem [thread:$0]  %s2, 24576, %s20, [#allocation3], 128, 128, 8
    $region13: #{nlgnn_forward.1} parent=1 // pred_fallthru
      _
    // Predicated region
    $region14: #{nlgnn_forward.1} parent=1 // pred_check
      _
    $region15: #{nlgnn_forward.1} parent=1 // pred_check_branch
      %27 = sbr.rel (0) target = $region17
    $region16: #{nlgnn_forward.1} parent=1 // pred_region
      _
    $region17: #{nlgnn_forward.1} parent=1 // pred_fallthru
      _
    // Predicated region
    $region18: #{nlgnn_forward.1} parent=1 // pred_check
      _
    $region19: #{nlgnn_forward.1} parent=1 // pred_check_branch
      %29 = sbr.rel (0) target = $region21
    $region20: #{nlgnn_forward.1} parent=1 // pred_region
      %30 = dma.done [#allocation3], 24576
    $region21: #{nlgnn_forward.1} parent=1 // pred_fallthru
      _
    %v31 = vld [vmem:[%s0] sm:$0xff]
    %v32 = vld [vmem:[%s0 + $0x8] sm:$0xff]
    %v33 = vld [vmem:[%s0 + $0x10] sm:$0xff]
    %v34 = vld [vmem:[%s0 + $0x18] sm:$0xff]
    %v35 = vld [vmem:[%s0 + $0x20] sm:$0xff]
    %v36 = vld [vmem:[%s0 + $0x28] sm:$0xff]
    %v37 = vld [vmem:[%s0 + $0x30] sm:$0xff]
    %v38 = vld [vmem:[%s0 + $0x38] sm:$0xff]
    %v39 = vld [vmem:[%s1] sm:$0xff]
    %v40 = vld [vmem:[%s1 + $0x8] sm:$0xff]
    %v41 = vld [vmem:[%s1 + $0x10] sm:$0xff]
    %v42 = vld [vmem:[%s1 + $0x18] sm:$0xff]
    %v43 = vld [vmem:[%s1 + $0x20] sm:$0xff]
    %v44 = vld [vmem:[%s1 + $0x28] sm:$0xff]
    %v45 = vld [vmem:[%s1 + $0x30] sm:$0xff]
    %v46 = vld [vmem:[%s1 + $0x38] sm:$0xff]
    %v47 = vld [vmem:[#allocation2] sm:$0xff]
    %v48 = vld [vmem:[#allocation2 + $0x8] sm:$0xff]
    %v49 = vld [vmem:[#allocation2 + $0x10] sm:$0xff]
    %v50 = vld [vmem:[#allocation2 + $0x18] sm:$0xff]
    %v51 = vld [vmem:[#allocation2 + $0x20] sm:$0xff]
    %v52 = vld [vmem:[#allocation2 + $0x28] sm:$0xff]
    %v53 = vld [vmem:[#allocation2 + $0x30] sm:$0xff]
    %v54 = vld [vmem:[#allocation2 + $0x38] sm:$0xff]
    %v55 = vld [vmem:[#allocation2 + $0x40] sm:$0xff]
    %v56 = vld [vmem:[#allocation2 + $0x48] sm:$0xff]
    %v57 = vld [vmem:[#allocation2 + $0x50] sm:$0xff]
    %v58 = vld [vmem:[#allocation2 + $0x58] sm:$0xff]
    %v59 = vld [vmem:[#allocation2 + $0x60] sm:$0xff]
    %v60 = vld [vmem:[#allocation2 + $0x68] sm:$0xff]
    %v61 = vld [vmem:[#allocation2 + $0x70] sm:$0xff]
    %v62 = vld [vmem:[#allocation2 + $0x78] sm:$0xff]
    %63 = vmatprep.subr.mxu0 0.0
    %64 = vmatpush1.msra.mxu0 %v62
    %65 = vmatprep.subr.mxu0 0.0
    %66 = vmatpush1.msra.mxu0 %v61
    %67 = vmatprep.subr.mxu0 0.0
    %68 = vmatpush1.msra.mxu0 %v60
    %69 = vmatprep.subr.mxu0 0.0
    %70 = vmatpush1.msra.mxu0 %v59
    %71 = vmatprep.subr.mxu0 0.0
    %72 = vmatpush1.msra.mxu0 %v58
    %73 = vmatprep.subr.mxu0 0.0
    %74 = vmatpush1.msra.mxu0 %v57
    %75 = vmatprep.subr.mxu0 0.0
    %76 = vmatpush1.msra.mxu0 %v56
    %77 = vmatprep.subr.mxu0 0.0
    %78 = vmatpush1.msra.mxu0 %v55
    %79 = vmatprep.subr.mxu0 0.0
    %80 = vmatpush1.msra.mxu0 %v54
    %81 = vmatprep.subr.mxu0 0.0
    %82 = vmatpush1.msra.mxu0 %v53
    %83 = vmatprep.subr.mxu0 0.0
    %84 = vmatpush1.msra.mxu0 %v52
    %85 = vmatprep.subr.mxu0 0.0
    %86 = vmatpush1.msra.mxu0 %v51
    %87 = vmatprep.subr.mxu0 0.0
    %88 = vmatpush1.msra.mxu0 %v50
    %89 = vmatprep.subr.mxu0 0.0
    %90 = vmatpush1.msra.mxu0 %v49
    %91 = vmatprep.subr.mxu0 0.0
    %92 = vmatpush1.msra.mxu0 %v48
    %93 = vmatprep.subr.mxu0 0.0
    %94 = vmatpush1.msra.mxu0 %v47
    %95 = vmatprep.subr.mxu0 0.0
    %96 = vmatpush2.msra.mxu0 0.0
    %97 = vmatprep.subr.mxu0 0.0
    %98 = vmatpush2.msra.mxu0 0.0
    %99 = vmatprep.subr.mxu0 0.0
    %100 = vmatpush2.msra.mxu0 0.0
    %101 = vmatprep.subr.mxu0 0.0
    %102 = vmatpush2.msra.mxu0 0.0
    %103 = vmatprep.subr.mxu0 0.0
    %104 = vmatpush2.msra.mxu0 0.0
    %105 = vmatprep.subr.mxu0 0.0
    %106 = vmatpush2.msra.mxu0 0.0
    %107 = vmatprep.subr.mxu0 0.0
    %108 = vmatpush2.msra.mxu0 0.0
    %109 = vmatprep.subr.mxu0 0.0
    %110 = vmatpush2.msra.mxu0 0.0
    %111 = vmatprep.subr.mxu0 0.0
    %112 = vmatpush2.msra.mxu0 0.0
    %113 = vmatprep.subr.mxu0 0.0
    %114 = vmatpush2.msra.mxu0 0.0
    %115 = vmatprep.subr.mxu0 0.0
    %116 = vmatpush2.msra.mxu0 0.0
    %117 = vmatprep.subr.mxu0 0.0
    %118 = vmatpush2.msra.mxu0 0.0
    %119 = vmatprep.subr.mxu0 0.0
    %120 = vmatpush2.msra.mxu0 0.0
    %121 = vmatprep.subr.mxu0 0.0
    %122 = vmatpush2.msra.mxu0 0.0
    %123 = vmatprep.subr.mxu0 0.0
    %124 = vmatpush2.msra.mxu0 0.0
    %125 = vmatprep.subr.mxu0 0.0
    %126 = vmatpush2.msra.mxu0 0.0
    %127 = vmatprep.mubr.f32.mxu0 0.0
    %128 = vmatmul.mubr.f32.gmra.mxu0 %v39
    %v129 = vpop.f32.mrf.mxu0
    %v130 = vadd.f32 0.0, %v129
    %v131 = vpop.f32.mrf.mxu0
    %132 = vmatprep.mubr.f32.mxu0 0.0
    %133 = vmatmul.mubr.f32.gmra.mxu0 %v40
    %v134 = vpop.f32.mrf.mxu0
    %v135 = vadd.f32 0.0, %v134
    %v136 = vpop.f32.mrf.mxu0
    %137 = vmatprep.mubr.f32.mxu0 0.0
    %138 = vmatmul.mubr.f32.gmra.mxu0 %v41
    %v139 = vpop.f32.mrf.mxu0
    %v140 = vadd.f32 0.0, %v139
    %v141 = vpop.f32.mrf.mxu0
    %142 = vmatprep.mubr.f32.mxu0 0.0
    %143 = vmatmul.mubr.f32.gmra.mxu0 %v42
    %v144 = vpop.f32.mrf.mxu0
    %v145 = vadd.f32 0.0, %v144
    %v146 = vpop.f32.mrf.mxu0
    %147 = vmatprep.mubr.f32.mxu0 0.0
    %148 = vmatmul.mubr.f32.gmra.mxu0 %v43
    %v149 = vpop.f32.mrf.mxu0
    %v150 = vadd.f32 0.0, %v149
    %v151 = vpop.f32.mrf.mxu0
    %152 = vmatprep.mubr.f32.mxu0 0.0
    %153 = vmatmul.mubr.f32.gmra.mxu0 %v44
    %v154 = vpop.f32.mrf.mxu0
    %v155 = vadd.f32 0.0, %v154
    %v156 = vpop.f32.mrf.mxu0
    %157 = vmatprep.mubr.f32.mxu0 0.0
    %158 = vmatmul.mubr.f32.gmra.mxu0 %v45
    %v159 = vpop.f32.mrf.mxu0
    %v160 = vadd.f32 0.0, %v159
    %v161 = vpop.f32.mrf.mxu0
    %162 = vmatprep.mubr.f32.mxu0 0.0
    %163 = vmatmul.mubr.f32.gmra.mxu0 %v46
    %v164 = vpop.f32.mrf.mxu0
    %v165 = vadd.f32 0.0, %v164
    %v166 = vpop.f32.mrf.mxu0
    %167 = vdwg.mxu0
    %v168 = vld [vmem:[%s3] sm:$0x1]
    %v170 = vlaneseq
    %v171 = vshrl.u32 %v170, 7
    %v172 = vsub.s32 0, %v171
    %v173 = vrot.slane %v168, %v172
    %vm175 = vcmask 523264
    %v177 = vsel %vm175, %v31, 0
    %v180 = vsel %vm175, %v32, 0
    %v183 = vsel %vm175, %v33, 0
    %v186 = vsel %vm175, %v34, 0
    %v189 = vsel %vm175, %v35, 0
    %v192 = vsel %vm175, %v36, 0
    %v195 = vsel %vm175, %v37, 0
    %v198 = vsel %vm175, %v38, 0
    %200 = vmatprep.subr.mxu0 0.0
    %201 = vmatpush1.msra.mxu0 0.0
    %202 = vmatprep.subr.mxu0 0.0
    %203 = vmatpush1.msra.mxu0 0.0
    %204 = vmatprep.subr.mxu0 0.0
    %205 = vmatpush1.msra.mxu0 0.0
    %206 = vmatprep.subr.mxu0 0.0
    %207 = vmatpush1.msra.mxu0 0.0
    %208 = vmatprep.subr.mxu0 0.0
    %209 = vmatpush1.msra.mxu0 0.0
    %210 = vmatprep.subr.mxu0 0.0
    %211 = vmatpush1.msra.mxu0 0.0
    %212 = vmatprep.subr.mxu0 0.0
    %213 = vmatpush1.msra.mxu0 0.0
    %214 = vmatprep.subr.mxu0 0.0
    %215 = vmatpush1.msra.mxu0 0.0
    %216 = vmatprep.subr.mxu0 0.0
    %217 = vmatpush1.msra.mxu0 %v165
    %218 = vmatprep.subr.mxu0 0.0
    %219 = vmatpush1.msra.mxu0 %v160
    %220 = vmatprep.subr.mxu0 0.0
    %221 = vmatpush1.msra.mxu0 %v155
    %222 = vmatprep.subr.mxu0 0.0
    %223 = vmatpush1.msra.mxu0 %v150
    %224 = vmatprep.subr.mxu0 0.0
    %225 = vmatpush1.msra.mxu0 %v145
    %226 = vmatprep.subr.mxu0 0.0
    %227 = vmatpush1.msra.mxu0 %v140
    %228 = vmatprep.subr.mxu0 0.0
    %229 = vmatpush1.msra.mxu0 %v135
    %230 = vmatprep.subr.mxu0 0.0
    %231 = vmatpush1.msra.mxu0 %v130
    %232 = vmatprep.subr.mxu0 0.0
    %233 = vmatpush2.msra.mxu0 0.0
    %234 = vmatprep.subr.mxu0 0.0
    %235 = vmatpush2.msra.mxu0 0.0
    %236 = vmatprep.subr.mxu0 0.0
    %237 = vmatpush2.msra.mxu0 0.0
    %238 = vmatprep.subr.mxu0 0.0
    %239 = vmatpush2.msra.mxu0 0.0
    %240 = vmatprep.subr.mxu0 0.0
    %241 = vmatpush2.msra.mxu0 0.0
    %242 = vmatprep.subr.mxu0 0.0
    %243 = vmatpush2.msra.mxu0 0.0
    %244 = vmatprep.subr.mxu0 0.0
    %245 = vmatpush2.msra.mxu0 0.0
    %246 = vmatprep.subr.mxu0 0.0
    %247 = vmatpush2.msra.mxu0 0.0
    %248 = vmatprep.subr.mxu0 0.0
    %249 = vmatpush2.msra.mxu0 0.0
    %250 = vmatprep.subr.mxu0 0.0
    %251 = vmatpush2.msra.mxu0 0.0
    %252 = vmatprep.subr.mxu0 0.0
    %253 = vmatpush2.msra.mxu0 0.0
    %254 = vmatprep.subr.mxu0 0.0
    %255 = vmatpush2.msra.mxu0 0.0
    %256 = vmatprep.subr.mxu0 0.0
    %257 = vmatpush2.msra.mxu0 0.0
    %258 = vmatprep.subr.mxu0 0.0
    %259 = vmatpush2.msra.mxu0 0.0
    %260 = vmatprep.subr.mxu0 0.0
    %261 = vmatpush2.msra.mxu0 0.0
    %262 = vmatprep.subr.mxu0 0.0
    %263 = vmatpush2.msra.mxu0 0.0
    %264 = vmatprep.mubr.f32.mxu0 0.0
    %265 = vmatmul.mubr.f32.gmra.mxu0 %v177
    %v266 = vpop.f32.mrf.mxu0
    %v267 = vadd.f32 %v173, %v266
    %v268 = vpop.f32.mrf.mxu0
    %269 = vmatprep.mubr.f32.mxu0 0.0
    %270 = vmatmul.mubr.f32.gmra.mxu0 %v180
    %v271 = vpop.f32.mrf.mxu0
    %v272 = vadd.f32 %v173, %v271
    %v273 = vpop.f32.mrf.mxu0
    %274 = vmatprep.mubr.f32.mxu0 0.0
    %275 = vmatmul.mubr.f32.gmra.mxu0 %v183
    %v276 = vpop.f32.mrf.mxu0
    %v277 = vadd.f32 %v173, %v276
    %v278 = vpop.f32.mrf.mxu0
    %279 = vmatprep.mubr.f32.mxu0 0.0
    %280 = vmatmul.mubr.f32.gmra.mxu0 %v186
    %v281 = vpop.f32.mrf.mxu0
    %v282 = vadd.f32 %v173, %v281
    %v283 = vpop.f32.mrf.mxu0
    %284 = vmatprep.mubr.f32.mxu0 0.0
    %285 = vmatmul.mubr.f32.gmra.mxu0 %v189
    %v286 = vpop.f32.mrf.mxu0
    %v287 = vadd.f32 %v173, %v286
    %v288 = vpop.f32.mrf.mxu0
    %289 = vmatprep.mubr.f32.mxu0 0.0
    %290 = vmatmul.mubr.f32.gmra.mxu0 %v192
    %v291 = vpop.f32.mrf.mxu0
    %v292 = vadd.f32 %v173, %v291
    %v293 = vpop.f32.mrf.mxu0
    %294 = vmatprep.mubr.f32.mxu0 0.0
    %295 = vmatmul.mubr.f32.gmra.mxu0 %v195
    %v296 = vpop.f32.mrf.mxu0
    %v297 = vadd.f32 %v173, %v296
    %v298 = vpop.f32.mrf.mxu0
    %299 = vmatprep.mubr.f32.mxu0 0.0
    %300 = vmatmul.mubr.f32.gmra.mxu0 %v198
    %v301 = vpop.f32.mrf.mxu0
    %v302 = vadd.f32 %v173, %v301
    %v303 = vpop.f32.mrf.mxu0
    %304 = vdwg.mxu0
    %v305 = vmax.f32 %v267, 0.0
    %v306 = vmax.f32 %v272, 0.0
    %v307 = vmax.f32 %v277, 0.0
    %v308 = vmax.f32 %v282, 0.0
    %v309 = vmax.f32 %v287, 0.0
    %v310 = vmax.f32 %v292, 0.0
    %v311 = vmax.f32 %v297, 0.0
    %v312 = vmax.f32 %v302, 0.0
    %s313 = scalar_lea.vmem [#allocation2], 128
    %v314 = vld [vmem:[%s313] sm:$0xff]
    %v315 = vld [vmem:[%s313 + $0x8] sm:$0xff]
    %v316 = vld [vmem:[%s313 + $0x10] sm:$0xff]
    %v317 = vld [vmem:[%s313 + $0x18] sm:$0xff]
    %v318 = vld [vmem:[%s313 + $0x20] sm:$0xff]
    %v319 = vld [vmem:[%s313 + $0x28] sm:$0xff]
    %v320 = vld [vmem:[%s313 + $0x30] sm:$0xff]
    %v321 = vld [vmem:[%s313 + $0x38] sm:$0xff]
    %v322 = vld [vmem:[%s313 + $0x40] sm:$0xff]
    %v323 = vld [vmem:[%s313 + $0x48] sm:$0xff]
    %v324 = vld [vmem:[%s313 + $0x50] sm:$0xff]
    %v325 = vld [vmem:[%s313 + $0x58] sm:$0xff]
    %v326 = vld [vmem:[%s313 + $0x60] sm:$0xff]
    %v327 = vld [vmem:[%s313 + $0x68] sm:$0xff]
    %v328 = vld [vmem:[%s313 + $0x70] sm:$0xff]
    %v329 = vld [vmem:[%s313 + $0x78] sm:$0xff]
    %330 = vmatprep.subr.mxu0 0.0
    %331 = vmatpush1.msra.mxu0 %v329
    %332 = vmatprep.subr.mxu0 0.0
    %333 = vmatpush1.msra.mxu0 %v328
    %334 = vmatprep.subr.mxu0 0.0
    %335 = vmatpush1.msra.mxu0 %v327
    %336 = vmatprep.subr.mxu0 0.0
    %337 = vmatpush1.msra.mxu0 %v326
    %338 = vmatprep.subr.mxu0 0.0
    %339 = vmatpush1.msra.mxu0 %v325
    %340 = vmatprep.subr.mxu0 0.0
    %341 = vmatpush1.msra.mxu0 %v324
    %342 = vmatprep.subr.mxu0 0.0
    %343 = vmatpush1.msra.mxu0 %v323
    %344 = vmatprep.subr.mxu0 0.0
    %345 = vmatpush1.msra.mxu0 %v322
    %346 = vmatprep.subr.mxu0 0.0
    %347 = vmatpush1.msra.mxu0 %v321
    %348 = vmatprep.subr.mxu0 0.0
    %349 = vmatpush1.msra.mxu0 %v320
    %350 = vmatprep.subr.mxu0 0.0
    %351 = vmatpush1.msra.mxu0 %v319
    %352 = vmatprep.subr.mxu0 0.0
    %353 = vmatpush1.msra.mxu0 %v318
    %354 = vmatprep.subr.mxu0 0.0
    %355 = vmatpush1.msra.mxu0 %v317
    %356 = vmatprep.subr.mxu0 0.0
    %357 = vmatpush1.msra.mxu0 %v316
    %358 = vmatprep.subr.mxu0 0.0
    %359 = vmatpush1.msra.mxu0 %v315
    %360 = vmatprep.subr.mxu0 0.0
    %361 = vmatpush1.msra.mxu0 %v314
    %362 = vmatprep.subr.mxu0 0.0
    %363 = vmatpush2.msra.mxu0 0.0
    %364 = vmatprep.subr.mxu0 0.0
    %365 = vmatpush2.msra.mxu0 0.0
    %366 = vmatprep.subr.mxu0 0.0
    %367 = vmatpush2.msra.mxu0 0.0
    %368 = vmatprep.subr.mxu0 0.0
    %369 = vmatpush2.msra.mxu0 0.0
    %370 = vmatprep.subr.mxu0 0.0
    %371 = vmatpush2.msra.mxu0 0.0
    %372 = vmatprep.subr.mxu0 0.0
    %373 = vmatpush2.msra.mxu0 0.0
    %374 = vmatprep.subr.mxu0 0.0
    %375 = vmatpush2.msra.mxu0 0.0
    %376 = vmatprep.subr.mxu0 0.0
    %377 = vmatpush2.msra.mxu0 0.0
    %378 = vmatprep.subr.mxu0 0.0
    %379 = vmatpush2.msra.mxu0 0.0
    %380 = vmatprep.subr.mxu0 0.0
    %381 = vmatpush2.msra.mxu0 0.0
    %382 = vmatprep.subr.mxu0 0.0
    %383 = vmatpush2.msra.mxu0 0.0
    %384 = vmatprep.subr.mxu0 0.0
    %385 = vmatpush2.msra.mxu0 0.0
    %386 = vmatprep.subr.mxu0 0.0
    %387 = vmatpush2.msra.mxu0 0.0
    %388 = vmatprep.subr.mxu0 0.0
    %389 = vmatpush2.msra.mxu0 0.0
    %390 = vmatprep.subr.mxu0 0.0
    %391 = vmatpush2.msra.mxu0 0.0
    %392 = vmatprep.subr.mxu0 0.0
    %393 = vmatpush2.msra.mxu0 0.0
    %394 = vmatprep.mubr.f32.mxu0 0.0
    %395 = vmatmul.mubr.f32.gmra.mxu0 %v305
    %v396 = vpop.f32.mrf.mxu0
    %v397 = vadd.f32 0.0, %v396
    %v398 = vpop.f32.mrf.mxu0
    %399 = vmatprep.mubr.f32.mxu0 0.0
    %400 = vmatmul.mubr.f32.gmra.mxu0 %v306
    %v401 = vpop.f32.mrf.mxu0
    %v402 = vadd.f32 0.0, %v401
    %v403 = vpop.f32.mrf.mxu0
    %404 = vmatprep.mubr.f32.mxu0 0.0
    %405 = vmatmul.mubr.f32.gmra.mxu0 %v307
    %v406 = vpop.f32.mrf.mxu0
    %v407 = vadd.f32 0.0, %v406
    %v408 = vpop.f32.mrf.mxu0
    %409 = vmatprep.mubr.f32.mxu0 0.0
    %410 = vmatmul.mubr.f32.gmra.mxu0 %v308
    %v411 = vpop.f32.mrf.mxu0
    %v412 = vadd.f32 0.0, %v411
    %v413 = vpop.f32.mrf.mxu0
    %414 = vmatprep.mubr.f32.mxu0 0.0
    %415 = vmatmul.mubr.f32.gmra.mxu0 %v309
    %v416 = vpop.f32.mrf.mxu0
    %v417 = vadd.f32 0.0, %v416
    %v418 = vpop.f32.mrf.mxu0
    %419 = vmatprep.mubr.f32.mxu0 0.0
    %420 = vmatmul.mubr.f32.gmra.mxu0 %v310
    %v421 = vpop.f32.mrf.mxu0
    %v422 = vadd.f32 0.0, %v421
    %v423 = vpop.f32.mrf.mxu0
    %424 = vmatprep.mubr.f32.mxu0 0.0
    %425 = vmatmul.mubr.f32.gmra.mxu0 %v311
    %v426 = vpop.f32.mrf.mxu0
    %v427 = vadd.f32 0.0, %v426
    %v428 = vpop.f32.mrf.mxu0
    %429 = vmatprep.mubr.f32.mxu0 0.0
    %430 = vmatmul.mubr.f32.gmra.mxu0 %v312
    %v431 = vpop.f32.mrf.mxu0
    %v432 = vadd.f32 0.0, %v431
    %v433 = vpop.f32.mrf.mxu0
    %434 = vdwg.mxu0
    %s435 = scalar_lea.vmem %s3, 1
    %v436 = vld [vmem:[%s435] sm:$0x1]
    %v438 = vlaneseq
    %v439 = vshrl.u32 %v438, 7
    %v440 = vsub.s32 0, %v439
    %v441 = vrot.slane %v436, %v440
    %443 = vmatprep.subr.mxu0 0.0
    %444 = vmatpush1.msra.mxu0 0.0
    %445 = vmatprep.subr.mxu0 0.0
    %446 = vmatpush1.msra.mxu0 0.0
    %447 = vmatprep.subr.mxu0 0.0
    %448 = vmatpush1.msra.mxu0 0.0
    %449 = vmatprep.subr.mxu0 0.0
    %450 = vmatpush1.msra.mxu0 0.0
    %451 = vmatprep.subr.mxu0 0.0
    %452 = vmatpush1.msra.mxu0 0.0
    %453 = vmatprep.subr.mxu0 0.0
    %454 = vmatpush1.msra.mxu0 0.0
    %455 = vmatprep.subr.mxu0 0.0
    %456 = vmatpush1.msra.mxu0 0.0
    %457 = vmatprep.subr.mxu0 0.0
    %458 = vmatpush1.msra.mxu0 0.0
    %459 = vmatprep.subr.mxu0 0.0
    %460 = vmatpush1.msra.mxu0 %v432
    %461 = vmatprep.subr.mxu0 0.0
    %462 = vmatpush1.msra.mxu0 %v427
    %463 = vmatprep.subr.mxu0 0.0
    %464 = vmatpush1.msra.mxu0 %v422
    %465 = vmatprep.subr.mxu0 0.0
    %466 = vmatpush1.msra.mxu0 %v417
    %467 = vmatprep.subr.mxu0 0.0
    %468 = vmatpush1.msra.mxu0 %v412
    %469 = vmatprep.subr.mxu0 0.0
    %470 = vmatpush1.msra.mxu0 %v407
    %471 = vmatprep.subr.mxu0 0.0
    %472 = vmatpush1.msra.mxu0 %v402
    %473 = vmatprep.subr.mxu0 0.0
    %474 = vmatpush1.msra.mxu0 %v397
    %475 = vmatprep.subr.mxu0 0.0
    %476 = vmatpush2.msra.mxu0 0.0
    %477 = vmatprep.subr.mxu0 0.0
    %478 = vmatpush2.msra.mxu0 0.0
    %479 = vmatprep.subr.mxu0 0.0
    %480 = vmatpush2.msra.mxu0 0.0
    %481 = vmatprep.subr.mxu0 0.0
    %482 = vmatpush2.msra.mxu0 0.0
    %483 = vmatprep.subr.mxu0 0.0
    %484 = vmatpush2.msra.mxu0 0.0
    %485 = vmatprep.subr.mxu0 0.0
    %486 = vmatpush2.msra.mxu0 0.0
    %487 = vmatprep.subr.mxu0 0.0
    %488 = vmatpush2.msra.mxu0 0.0
    %489 = vmatprep.subr.mxu0 0.0
    %490 = vmatpush2.msra.mxu0 0.0
    %491 = vmatprep.subr.mxu0 0.0
    %492 = vmatpush2.msra.mxu0 0.0
    %493 = vmatprep.subr.mxu0 0.0
    %494 = vmatpush2.msra.mxu0 0.0
    %495 = vmatprep.subr.mxu0 0.0
    %496 = vmatpush2.msra.mxu0 0.0
    %497 = vmatprep.subr.mxu0 0.0
    %498 = vmatpush2.msra.mxu0 0.0
    %499 = vmatprep.subr.mxu0 0.0
    %500 = vmatpush2.msra.mxu0 0.0
    %501 = vmatprep.subr.mxu0 0.0
    %502 = vmatpush2.msra.mxu0 0.0
    %503 = vmatprep.subr.mxu0 0.0
    %504 = vmatpush2.msra.mxu0 0.0
    %505 = vmatprep.subr.mxu0 0.0
    %506 = vmatpush2.msra.mxu0 0.0
    %507 = vmatprep.mubr.f32.mxu0 0.0
    %508 = vmatmul.mubr.f32.gmra.mxu0 %v177
    %v509 = vpop.f32.mrf.mxu0
    %v510 = vadd.f32 %v441, %v509
    %v511 = vpop.f32.mrf.mxu0
    %512 = vmatprep.mubr.f32.mxu0 0.0
    %513 = vmatmul.mubr.f32.gmra.mxu0 %v180
    %v514 = vpop.f32.mrf.mxu0
    %v515 = vadd.f32 %v441, %v514
    %v516 = vpop.f32.mrf.mxu0
    %517 = vmatprep.mubr.f32.mxu0 0.0
    %518 = vmatmul.mubr.f32.gmra.mxu0 %v183
    %v519 = vpop.f32.mrf.mxu0
    %v520 = vadd.f32 %v441, %v519
    %v521 = vpop.f32.mrf.mxu0
    %522 = vmatprep.mubr.f32.mxu0 0.0
    %523 = vmatmul.mubr.f32.gmra.mxu0 %v186
    %v524 = vpop.f32.mrf.mxu0
    %v525 = vadd.f32 %v441, %v524
    %v526 = vpop.f32.mrf.mxu0
    %527 = vmatprep.mubr.f32.mxu0 0.0
    %528 = vmatmul.mubr.f32.gmra.mxu0 %v189
    %v529 = vpop.f32.mrf.mxu0
    %v530 = vadd.f32 %v441, %v529
    %v531 = vpop.f32.mrf.mxu0
    %532 = vmatprep.mubr.f32.mxu0 0.0
    %533 = vmatmul.mubr.f32.gmra.mxu0 %v192
    %v534 = vpop.f32.mrf.mxu0
    %v535 = vadd.f32 %v441, %v534
    %v536 = vpop.f32.mrf.mxu0
    %537 = vmatprep.mubr.f32.mxu0 0.0
    %538 = vmatmul.mubr.f32.gmra.mxu0 %v195
    %v539 = vpop.f32.mrf.mxu0
    %v540 = vadd.f32 %v441, %v539
    %v541 = vpop.f32.mrf.mxu0
    %542 = vmatprep.mubr.f32.mxu0 0.0
    %543 = vmatmul.mubr.f32.gmra.mxu0 %v198
    %v544 = vpop.f32.mrf.mxu0
    %v545 = vadd.f32 %v441, %v544
    %v546 = vpop.f32.mrf.mxu0
    %547 = vdwg.mxu0
    %v548 = vmax.f32 %v510, 0.0
    %v549 = vmax.f32 %v515, 0.0
    %v550 = vmax.f32 %v520, 0.0
    %v551 = vmax.f32 %v525, 0.0
    %v552 = vmax.f32 %v530, 0.0
    %v553 = vmax.f32 %v535, 0.0
    %v554 = vmax.f32 %v540, 0.0
    %v555 = vmax.f32 %v545, 0.0
    %s556 = scalar_lea.vmem [#allocation2], 256
    %v557 = vld [vmem:[%s556] sm:$0xff]
    %v558 = vld [vmem:[%s556 + $0x8] sm:$0xff]
    %v559 = vld [vmem:[%s556 + $0x10] sm:$0xff]
    %v560 = vld [vmem:[%s556 + $0x18] sm:$0xff]
    %v561 = vld [vmem:[%s556 + $0x20] sm:$0xff]
    %v562 = vld [vmem:[%s556 + $0x28] sm:$0xff]
    %v563 = vld [vmem:[%s556 + $0x30] sm:$0xff]
    %v564 = vld [vmem:[%s556 + $0x38] sm:$0xff]
    %v565 = vld [vmem:[%s556 + $0x40] sm:$0xff]
    %v566 = vld [vmem:[%s556 + $0x48] sm:$0xff]
    %v567 = vld [vmem:[%s556 + $0x50] sm:$0xff]
    %v568 = vld [vmem:[%s556 + $0x58] sm:$0xff]
    %v569 = vld [vmem:[%s556 + $0x60] sm:$0xff]
    %v570 = vld [vmem:[%s556 + $0x68] sm:$0xff]
    %v571 = vld [vmem:[%s556 + $0x70] sm:$0xff]
    %v572 = vld [vmem:[%s556 + $0x78] sm:$0xff]
    %573 = vmatprep.subr.mxu0 0.0
    %574 = vmatpush1.msra.mxu0 %v572
    %575 = vmatprep.subr.mxu0 0.0
    %576 = vmatpush1.msra.mxu0 %v571
    %577 = vmatprep.subr.mxu0 0.0
    %578 = vmatpush1.msra.mxu0 %v570
    %579 = vmatprep.subr.mxu0 0.0
    %580 = vmatpush1.msra.mxu0 %v569
    %581 = vmatprep.subr.mxu0 0.0
    %582 = vmatpush1.msra.mxu0 %v568
    %583 = vmatprep.subr.mxu0 0.0
    %584 = vmatpush1.msra.mxu0 %v567
    %585 = vmatprep.subr.mxu0 0.0
    %586 = vmatpush1.msra.mxu0 %v566
    %587 = vmatprep.subr.mxu0 0.0
    %588 = vmatpush1.msra.mxu0 %v565
    %589 = vmatprep.subr.mxu0 0.0
    %590 = vmatpush1.msra.mxu0 %v564
    %591 = vmatprep.subr.mxu0 0.0
    %592 = vmatpush1.msra.mxu0 %v563
    %593 = vmatprep.subr.mxu0 0.0
    %594 = vmatpush1.msra.mxu0 %v562
    %595 = vmatprep.subr.mxu0 0.0
    %596 = vmatpush1.msra.mxu0 %v561
    %597 = vmatprep.subr.mxu0 0.0
    %598 = vmatpush1.msra.mxu0 %v560
    %599 = vmatprep.subr.mxu0 0.0
    %600 = vmatpush1.msra.mxu0 %v559
    %601 = vmatprep.subr.mxu0 0.0
    %602 = vmatpush1.msra.mxu0 %v558
    %603 = vmatprep.subr.mxu0 0.0
    %604 = vmatpush1.msra.mxu0 %v557
    %605 = vmatprep.subr.mxu0 0.0
    %606 = vmatpush2.msra.mxu0 0.0
    %607 = vmatprep.subr.mxu0 0.0
    %608 = vmatpush2.msra.mxu0 0.0
    %609 = vmatprep.subr.mxu0 0.0
    %610 = vmatpush2.msra.mxu0 0.0
    %611 = vmatprep.subr.mxu0 0.0
    %612 = vmatpush2.msra.mxu0 0.0
    %613 = vmatprep.subr.mxu0 0.0
    %614 = vmatpush2.msra.mxu0 0.0
    %615 = vmatprep.subr.mxu0 0.0
    %616 = vmatpush2.msra.mxu0 0.0
    %617 = vmatprep.subr.mxu0 0.0
    %618 = vmatpush2.msra.mxu0 0.0
    %619 = vmatprep.subr.mxu0 0.0
    %620 = vmatpush2.msra.mxu0 0.0
    %621 = vmatprep.subr.mxu0 0.0
    %622 = vmatpush2.msra.mxu0 0.0
    %623 = vmatprep.subr.mxu0 0.0
    %624 = vmatpush2.msra.mxu0 0.0
    %625 = vmatprep.subr.mxu0 0.0
    %626 = vmatpush2.msra.mxu0 0.0
    %627 = vmatprep.subr.mxu0 0.0
    %628 = vmatpush2.msra.mxu0 0.0
    %629 = vmatprep.subr.mxu0 0.0
    %630 = vmatpush2.msra.mxu0 0.0
    %631 = vmatprep.subr.mxu0 0.0
    %632 = vmatpush2.msra.mxu0 0.0
    %633 = vmatprep.subr.mxu0 0.0
    %634 = vmatpush2.msra.mxu0 0.0
    %635 = vmatprep.subr.mxu0 0.0
    %636 = vmatpush2.msra.mxu0 0.0
    %637 = vmatprep.mubr.f32.mxu0 0.0
    %638 = vmatmul.mubr.f32.gmra.mxu0 %v548
    %v639 = vpop.f32.mrf.mxu0
    %v640 = vadd.f32 0.0, %v639
    %v641 = vpop.f32.mrf.mxu0
    %642 = vmatprep.mubr.f32.mxu0 0.0
    %643 = vmatmul.mubr.f32.gmra.mxu0 %v549
    %v644 = vpop.f32.mrf.mxu0
    %v645 = vadd.f32 0.0, %v644
    %v646 = vpop.f32.mrf.mxu0
    %647 = vmatprep.mubr.f32.mxu0 0.0
    %648 = vmatmul.mubr.f32.gmra.mxu0 %v550
    %v649 = vpop.f32.mrf.mxu0
    %v650 = vadd.f32 0.0, %v649
    %v651 = vpop.f32.mrf.mxu0
    %652 = vmatprep.mubr.f32.mxu0 0.0
    %653 = vmatmul.mubr.f32.gmra.mxu0 %v551
    %v654 = vpop.f32.mrf.mxu0
    %v655 = vadd.f32 0.0, %v654
    %v656 = vpop.f32.mrf.mxu0
    %657 = vmatprep.mubr.f32.mxu0 0.0
    %658 = vmatmul.mubr.f32.gmra.mxu0 %v552
    %v659 = vpop.f32.mrf.mxu0
    %v660 = vadd.f32 0.0, %v659
    %v661 = vpop.f32.mrf.mxu0
    %662 = vmatprep.mubr.f32.mxu0 0.0
    %663 = vmatmul.mubr.f32.gmra.mxu0 %v553
    %v664 = vpop.f32.mrf.mxu0
    %v665 = vadd.f32 0.0, %v664
    %v666 = vpop.f32.mrf.mxu0
    %667 = vmatprep.mubr.f32.mxu0 0.0
    %668 = vmatmul.mubr.f32.gmra.mxu0 %v554
    %v669 = vpop.f32.mrf.mxu0
    %v670 = vadd.f32 0.0, %v669
    %v671 = vpop.f32.mrf.mxu0
    %672 = vmatprep.mubr.f32.mxu0 0.0
    %673 = vmatmul.mubr.f32.gmra.mxu0 %v555
    %v674 = vpop.f32.mrf.mxu0
    %v675 = vadd.f32 0.0, %v674
    %v676 = vpop.f32.mrf.mxu0
    %677 = vdwg.mxu0
    %s678 = scalar_lea.vmem %s3, 2
    %v679 = vld [vmem:[%s678] sm:$0x1]
    %v681 = vlaneseq
    %v682 = vshrl.u32 %v681, 7
    %v683 = vsub.s32 0, %v682
    %v684 = vrot.slane %v679, %v683
    %686 = vmatprep.subr.mxu0 0.0
    %687 = vmatpush1.msra.mxu0 0.0
    %688 = vmatprep.subr.mxu0 0.0
    %689 = vmatpush1.msra.mxu0 0.0
    %690 = vmatprep.subr.mxu0 0.0
    %691 = vmatpush1.msra.mxu0 0.0
    %692 = vmatprep.subr.mxu0 0.0
    %693 = vmatpush1.msra.mxu0 0.0
    %694 = vmatprep.subr.mxu0 0.0
    %695 = vmatpush1.msra.mxu0 0.0
    %696 = vmatprep.subr.mxu0 0.0
    %697 = vmatpush1.msra.mxu0 0.0
    %698 = vmatprep.subr.mxu0 0.0
    %699 = vmatpush1.msra.mxu0 0.0
    %700 = vmatprep.subr.mxu0 0.0
    %701 = vmatpush1.msra.mxu0 0.0
    %702 = vmatprep.subr.mxu0 0.0
    %703 = vmatpush1.msra.mxu0 %v675
    %704 = vmatprep.subr.mxu0 0.0
    %705 = vmatpush1.msra.mxu0 %v670
    %706 = vmatprep.subr.mxu0 0.0
    %707 = vmatpush1.msra.mxu0 %v665
    %708 = vmatprep.subr.mxu0 0.0
    %709 = vmatpush1.msra.mxu0 %v660
    %710 = vmatprep.subr.mxu0 0.0
    %711 = vmatpush1.msra.mxu0 %v655
    %712 = vmatprep.subr.mxu0 0.0
    %713 = vmatpush1.msra.mxu0 %v650
    %714 = vmatprep.subr.mxu0 0.0
    %715 = vmatpush1.msra.mxu0 %v645
    %716 = vmatprep.subr.mxu0 0.0
    %717 = vmatpush1.msra.mxu0 %v640
    %718 = vmatprep.subr.mxu0 0.0
    %719 = vmatpush2.msra.mxu0 0.0
    %720 = vmatprep.subr.mxu0 0.0
    %721 = vmatpush2.msra.mxu0 0.0
    %722 = vmatprep.subr.mxu0 0.0
    %723 = vmatpush2.msra.mxu0 0.0
    %724 = vmatprep.subr.mxu0 0.0
    %725 = vmatpush2.msra.mxu0 0.0
    %726 = vmatprep.subr.mxu0 0.0
    %727 = vmatpush2.msra.mxu0 0.0
    %728 = vmatprep.subr.mxu0 0.0
    %729 = vmatpush2.msra.mxu0 0.0
    %730 = vmatprep.subr.mxu0 0.0
    %731 = vmatpush2.msra.mxu0 0.0
    %732 = vmatprep.subr.mxu0 0.0
    %733 = vmatpush2.msra.mxu0 0.0
    %734 = vmatprep.subr.mxu0 0.0
    %735 = vmatpush2.msra.mxu0 0.0
    %736 = vmatprep.subr.mxu0 0.0
    %737 = vmatpush2.msra.mxu0 0.0
    %738 = vmatprep.subr.mxu0 0.0
    %739 = vmatpush2.msra.mxu0 0.0
    %740 = vmatprep.subr.mxu0 0.0
    %741 = vmatpush2.msra.mxu0 0.0
    %742 = vmatprep.subr.mxu0 0.0
    %743 = vmatpush2.msra.mxu0 0.0
    %744 = vmatprep.subr.mxu0 0.0
    %745 = vmatpush2.msra.mxu0 0.0
    %746 = vmatprep.subr.mxu0 0.0
    %747 = vmatpush2.msra.mxu0 0.0
    %748 = vmatprep.subr.mxu0 0.0
    %749 = vmatpush2.msra.mxu0 0.0
    %750 = vmatprep.mubr.f32.mxu0 0.0
    %751 = vmatmul.mubr.f32.gmra.mxu0 %v177
    %v752 = vpop.f32.mrf.mxu0
    %v753 = vadd.f32 %v684, %v752
    %v754 = vpop.f32.mrf.mxu0
    %755 = vmatprep.mubr.f32.mxu0 0.0
    %756 = vmatmul.mubr.f32.gmra.mxu0 %v180
    %v757 = vpop.f32.mrf.mxu0
    %v758 = vadd.f32 %v684, %v757
    %v759 = vpop.f32.mrf.mxu0
    %760 = vmatprep.mubr.f32.mxu0 0.0
    %761 = vmatmul.mubr.f32.gmra.mxu0 %v183
    %v762 = vpop.f32.mrf.mxu0
    %v763 = vadd.f32 %v684, %v762
    %v764 = vpop.f32.mrf.mxu0
    %765 = vmatprep.mubr.f32.mxu0 0.0
    %766 = vmatmul.mubr.f32.gmra.mxu0 %v186
    %v767 = vpop.f32.mrf.mxu0
    %v768 = vadd.f32 %v684, %v767
    %v769 = vpop.f32.mrf.mxu0
    %770 = vmatprep.mubr.f32.mxu0 0.0
    %771 = vmatmul.mubr.f32.gmra.mxu0 %v189
    %v772 = vpop.f32.mrf.mxu0
    %v773 = vadd.f32 %v684, %v772
    %v774 = vpop.f32.mrf.mxu0
    %775 = vmatprep.mubr.f32.mxu0 0.0
    %776 = vmatmul.mubr.f32.gmra.mxu0 %v192
    %v777 = vpop.f32.mrf.mxu0
    %v778 = vadd.f32 %v684, %v777
    %v779 = vpop.f32.mrf.mxu0
    %780 = vmatprep.mubr.f32.mxu0 0.0
    %781 = vmatmul.mubr.f32.gmra.mxu0 %v195
    %v782 = vpop.f32.mrf.mxu0
    %v783 = vadd.f32 %v684, %v782
    %v784 = vpop.f32.mrf.mxu0
    %785 = vmatprep.mubr.f32.mxu0 0.0
    %786 = vmatmul.mubr.f32.gmra.mxu0 %v198
    %v787 = vpop.f32.mrf.mxu0
    %v788 = vadd.f32 %v684, %v787
    %v789 = vpop.f32.mrf.mxu0
    %790 = vdwg.mxu0
    %s791 = scalar_lea.vmem [#allocation2], 384
    %v792 = vld [vmem:[%s791] sm:$0xff]
    %v793 = vld [vmem:[%s791 + $0x8] sm:$0xff]
    %v794 = vld [vmem:[%s791 + $0x10] sm:$0xff]
    %v795 = vld [vmem:[%s791 + $0x18] sm:$0xff]
    %v796 = vld [vmem:[%s791 + $0x20] sm:$0xff]
    %v797 = vld [vmem:[%s791 + $0x28] sm:$0xff]
    %v798 = vld [vmem:[%s791 + $0x30] sm:$0xff]
    %v799 = vld [vmem:[%s791 + $0x38] sm:$0xff]
    %v800 = vld [vmem:[%s791 + $0x40] sm:$0xff]
    %v801 = vld [vmem:[%s791 + $0x48] sm:$0xff]
    %v802 = vld [vmem:[%s791 + $0x50] sm:$0xff]
    %v803 = vld [vmem:[%s791 + $0x58] sm:$0xff]
    %v804 = vld [vmem:[%s791 + $0x60] sm:$0xff]
    %v805 = vld [vmem:[%s791 + $0x68] sm:$0xff]
    %v806 = vld [vmem:[%s791 + $0x70] sm:$0xff]
    %v807 = vld [vmem:[%s791 + $0x78] sm:$0xff]
    %s808 = scalar_lea.vmem %s3, 3
    %v809 = vld [vmem:[%s808] sm:$0x1]
    %v811 = vlaneseq
    %v812 = vshrl.u32 %v811, 7
    %v813 = vsub.s32 0, %v812
    %v814 = vrot.slane %v809, %v813
    %816 = vmatprep.subr.mxu0 0.0
    %817 = vmatpush1.msra.mxu0 %v807
    %818 = vmatprep.subr.mxu0 0.0
    %819 = vmatpush1.msra.mxu0 %v806
    %820 = vmatprep.subr.mxu0 0.0
    %821 = vmatpush1.msra.mxu0 %v805
    %822 = vmatprep.subr.mxu0 0.0
    %823 = vmatpush1.msra.mxu0 %v804
    %824 = vmatprep.subr.mxu0 0.0
    %825 = vmatpush1.msra.mxu0 %v803
    %826 = vmatprep.subr.mxu0 0.0
    %827 = vmatpush1.msra.mxu0 %v802
    %828 = vmatprep.subr.mxu0 0.0
    %829 = vmatpush1.msra.mxu0 %v801
    %830 = vmatprep.subr.mxu0 0.0
    %831 = vmatpush1.msra.mxu0 %v800
    %832 = vmatprep.subr.mxu0 0.0
    %833 = vmatpush1.msra.mxu0 %v799
    %834 = vmatprep.subr.mxu0 0.0
    %835 = vmatpush1.msra.mxu0 %v798
    %836 = vmatprep.subr.mxu0 0.0
    %837 = vmatpush1.msra.mxu0 %v797
    %838 = vmatprep.subr.mxu0 0.0
    %839 = vmatpush1.msra.mxu0 %v796
    %840 = vmatprep.subr.mxu0 0.0
    %841 = vmatpush1.msra.mxu0 %v795
    %842 = vmatprep.subr.mxu0 0.0
    %843 = vmatpush1.msra.mxu0 %v794
    %844 = vmatprep.subr.mxu0 0.0
    %845 = vmatpush1.msra.mxu0 %v793
    %846 = vmatprep.subr.mxu0 0.0
    %847 = vmatpush1.msra.mxu0 %v792
    %848 = vmatprep.subr.mxu0 0.0
    %849 = vmatpush2.msra.mxu0 0.0
    %850 = vmatprep.subr.mxu0 0.0
    %851 = vmatpush2.msra.mxu0 0.0
    %852 = vmatprep.subr.mxu0 0.0
    %853 = vmatpush2.msra.mxu0 0.0
    %854 = vmatprep.subr.mxu0 0.0
    %855 = vmatpush2.msra.mxu0 0.0
    %856 = vmatprep.subr.mxu0 0.0
    %857 = vmatpush2.msra.mxu0 0.0
    %858 = vmatprep.subr.mxu0 0.0
    %859 = vmatpush2.msra.mxu0 0.0
    %860 = vmatprep.subr.mxu0 0.0
    %861 = vmatpush2.msra.mxu0 0.0
    %862 = vmatprep.subr.mxu0 0.0
    %863 = vmatpush2.msra.mxu0 0.0
    %864 = vmatprep.subr.mxu0 0.0
    %865 = vmatpush2.msra.mxu0 0.0
    %866 = vmatprep.subr.mxu0 0.0
    %867 = vmatpush2.msra.mxu0 0.0
    %868 = vmatprep.subr.mxu0 0.0
    %869 = vmatpush2.msra.mxu0 0.0
    %870 = vmatprep.subr.mxu0 0.0
    %871 = vmatpush2.msra.mxu0 0.0
    %872 = vmatprep.subr.mxu0 0.0
    %873 = vmatpush2.msra.mxu0 0.0
    %874 = vmatprep.subr.mxu0 0.0
    %875 = vmatpush2.msra.mxu0 0.0
    %876 = vmatprep.subr.mxu0 0.0
    %877 = vmatpush2.msra.mxu0 0.0
    %878 = vmatprep.subr.mxu0 0.0
    %879 = vmatpush2.msra.mxu0 0.0
    %880 = vmatprep.mubr.f32.mxu0 0.0
    %881 = vmatmul.mubr.f32.gmra.mxu0 %v753
    %v882 = vpop.f32.mrf.mxu0
    %v883 = vadd.f32 %v814, %v882
    %v884 = vpop.f32.mrf.mxu0
    %885 = vmatprep.mubr.f32.mxu0 0.0
    %886 = vmatmul.mubr.f32.gmra.mxu0 %v758
    %v887 = vpop.f32.mrf.mxu0
    %v888 = vadd.f32 %v814, %v887
    %v889 = vpop.f32.mrf.mxu0
    %890 = vmatprep.mubr.f32.mxu0 0.0
    %891 = vmatmul.mubr.f32.gmra.mxu0 %v763
    %v892 = vpop.f32.mrf.mxu0
    %v893 = vadd.f32 %v814, %v892
    %v894 = vpop.f32.mrf.mxu0
    %895 = vmatprep.mubr.f32.mxu0 0.0
    %896 = vmatmul.mubr.f32.gmra.mxu0 %v768
    %v897 = vpop.f32.mrf.mxu0
    %v898 = vadd.f32 %v814, %v897
    %v899 = vpop.f32.mrf.mxu0
    %900 = vmatprep.mubr.f32.mxu0 0.0
    %901 = vmatmul.mubr.f32.gmra.mxu0 %v773
    %v902 = vpop.f32.mrf.mxu0
    %v903 = vadd.f32 %v814, %v902
    %v904 = vpop.f32.mrf.mxu0
    %905 = vmatprep.mubr.f32.mxu0 0.0
    %906 = vmatmul.mubr.f32.gmra.mxu0 %v778
    %v907 = vpop.f32.mrf.mxu0
    %v908 = vadd.f32 %v814, %v907
    %v909 = vpop.f32.mrf.mxu0
    %910 = vmatprep.mubr.f32.mxu0 0.0
    %911 = vmatmul.mubr.f32.gmra.mxu0 %v783
    %v912 = vpop.f32.mrf.mxu0
    %v913 = vadd.f32 %v814, %v912
    %v914 = vpop.f32.mrf.mxu0
    %915 = vmatprep.mubr.f32.mxu0 0.0
    %916 = vmatmul.mubr.f32.gmra.mxu0 %v788
    %v917 = vpop.f32.mrf.mxu0
    %v918 = vadd.f32 %v814, %v917
    %v919 = vpop.f32.mrf.mxu0
    %920 = vdwg.mxu0
    %v921 = vlaneseq
    %v922 = vshrl.u32 %v921, 7
    %v923 = vadd.s32 %v922, 8
    %v924 = vadd.s32 %v922, 16
    %v925 = vadd.s32 %v922, 24
    %v926 = vadd.s32 %v922, 32
    %v927 = vadd.s32 %v922, 40
    %v928 = vadd.s32 %v922, 48
    %v929 = vadd.s32 %v922, 56
    %v930 = vlaneseq
    %v931 = vand.u32 %v930, 127
    %vm932 = vcmp.eq.s32.totalorder %v922, %v931
    %vm933 = vcmp.eq.s32.totalorder %v923, %v931
    %vm934 = vcmp.eq.s32.totalorder %v924, %v931
    %vm935 = vcmp.eq.s32.totalorder %v925, %v931
    %vm936 = vcmp.eq.s32.totalorder %v926, %v931
    %vm937 = vcmp.eq.s32.totalorder %v927, %v931
    %vm938 = vcmp.eq.s32.totalorder %v928, %v931
    %vm939 = vcmp.eq.s32.totalorder %v929, %v931
    %v940 = vsel %vm932, %v883, 0.0
    %v941 = vsel %vm933, %v888, 0.0
    %v942 = vsel %vm934, %v893, 0.0
    %v943 = vsel %vm935, %v898, 0.0
    %v944 = vsel %vm936, %v903, 0.0
    %v945 = vsel %vm937, %v908, 0.0
    %v946 = vsel %vm938, %v913, 0.0
    %v947 = vsel %vm939, %v918, 0.0
    %v948 = vsel %vm175, %v940, 0.0
    %v949 = vsel %vm175, %v941, 0.0
    %v950 = vadd.f32 %v948, %v949
    %v951 = vsel %vm175, %v942, 0.0
    %v952 = vadd.f32 %v950, %v951
    %v953 = vsel %vm175, %v943, 0.0
    %v954 = vadd.f32 %v952, %v953
    %v955 = vsel %vm175, %v944, 0.0
    %v956 = vadd.f32 %v954, %v955
    %v957 = vsel %vm175, %v945, 0.0
    %v958 = vadd.f32 %v956, %v957
    %v959 = vsel %vm175, %v946, 0.0
    %v960 = vadd.f32 %v958, %v959
    %v961 = vsel %vm175, %v947, 0.0
    %v962 = vadd.f32 %v960, %v961
    %v963 = vrot.slane %v962, 4
    %v964 = vadd.f32 %v962, %v963
    %v965 = vrot.slane %v964, 2
    %v966 = vadd.f32 %v964, %v965
    %v967 = vrot.slane %v966, 1
    %v968 = vadd.f32 %v966, %v967
    %vm969 = vcmp.lt.f32.partialorder %v968, %v883
    %vm970 = vcmp.lt.f32.partialorder %v968, %v888
    %vm971 = vcmp.lt.f32.partialorder %v968, %v893
    %vm972 = vcmp.lt.f32.partialorder %v968, %v898
    %vm973 = vcmp.lt.f32.partialorder %v968, %v903
    %vm974 = vcmp.lt.f32.partialorder %v968, %v908
    %vm975 = vcmp.lt.f32.partialorder %v968, %v913
    %vm976 = vcmp.lt.f32.partialorder %v968, %v918
    %vm977 = vcmp.eq.f32.partialorder %v968, %v883
    %vm978 = vcmp.eq.f32.partialorder %v968, %v888
    %vm979 = vcmp.eq.f32.partialorder %v968, %v893
    %vm980 = vcmp.eq.f32.partialorder %v968, %v898
    %vm981 = vcmp.eq.f32.partialorder %v968, %v903
    %vm982 = vcmp.eq.f32.partialorder %v968, %v908
    %vm983 = vcmp.eq.f32.partialorder %v968, %v913
    %vm984 = vcmp.eq.f32.partialorder %v968, %v918
    %vm985 = vcmp.lt.s32.totalorder %v931, %v922
    %vm986 = vcmp.lt.s32.totalorder %v931, %v923
    %vm987 = vcmp.lt.s32.totalorder %v931, %v924
    %vm988 = vcmp.lt.s32.totalorder %v931, %v925
    %vm989 = vcmp.lt.s32.totalorder %v931, %v926
    %vm990 = vcmp.lt.s32.totalorder %v931, %v927
    %vm991 = vcmp.lt.s32.totalorder %v931, %v928
    %vm992 = vcmp.lt.s32.totalorder %v931, %v929
    %vm993 = vmand %vm977, %vm985
    %vm994 = vmand %vm978, %vm986
    %vm995 = vmand %vm979, %vm987
    %vm996 = vmand %vm980, %vm988
    %vm997 = vmand %vm981, %vm989
    %vm998 = vmand %vm982, %vm990
    %vm999 = vmand %vm983, %vm991
    %vm1000 = vmand %vm984, %vm992
    %vm1001 = vmor %vm969, %vm993
    %vm1002 = vmor %vm970, %vm994
    %vm1003 = vmor %vm971, %vm995
    %vm1004 = vmor %vm972, %vm996
    %vm1005 = vmor %vm973, %vm997
    %vm1006 = vmor %vm974, %vm998
    %vm1007 = vmor %vm975, %vm999
    %vm1008 = vmor %vm976, %vm1000
    %vm1009 = vcmp.lt.f32.partialorder %v883, %v968
    %vm1010 = vcmp.lt.f32.partialorder %v888, %v968
    %vm1011 = vcmp.lt.f32.partialorder %v893, %v968
    %vm1012 = vcmp.lt.f32.partialorder %v898, %v968
    %vm1013 = vcmp.lt.f32.partialorder %v903, %v968
    %vm1014 = vcmp.lt.f32.partialorder %v908, %v968
    %vm1015 = vcmp.lt.f32.partialorder %v913, %v968
    %vm1016 = vcmp.lt.f32.partialorder %v918, %v968
    %vm1017 = vcmp.eq.f32.partialorder %v883, %v968
    %vm1018 = vcmp.eq.f32.partialorder %v888, %v968
    %vm1019 = vcmp.eq.f32.partialorder %v893, %v968
    %vm1020 = vcmp.eq.f32.partialorder %v898, %v968
    %vm1021 = vcmp.eq.f32.partialorder %v903, %v968
    %vm1022 = vcmp.eq.f32.partialorder %v908, %v968
    %vm1023 = vcmp.eq.f32.partialorder %v913, %v968
    %vm1024 = vcmp.eq.f32.partialorder %v918, %v968
    %vm1025 = vcmp.lt.s32.totalorder %v922, %v931
    %vm1026 = vcmp.lt.s32.totalorder %v923, %v931
    %vm1027 = vcmp.lt.s32.totalorder %v924, %v931
    %vm1028 = vcmp.lt.s32.totalorder %v925, %v931
    %vm1029 = vcmp.lt.s32.totalorder %v926, %v931
    %vm1030 = vcmp.lt.s32.totalorder %v927, %v931
    %vm1031 = vcmp.lt.s32.totalorder %v928, %v931
    %vm1032 = vcmp.lt.s32.totalorder %v929, %v931
    %vm1033 = vmand %vm1017, %vm1025
    %vm1034 = vmand %vm1018, %vm1026
    %vm1035 = vmand %vm1019, %vm1027
    %vm1036 = vmand %vm1020, %vm1028
    %vm1037 = vmand %vm1021, %vm1029
    %vm1038 = vmand %vm1022, %vm1030
    %vm1039 = vmand %vm1023, %vm1031
    %vm1040 = vmand %vm1024, %vm1032
    %vm1041 = vmor %vm1009, %vm1033
    %vm1042 = vmor %vm1010, %vm1034
    %vm1043 = vmor %vm1011, %vm1035
    %vm1044 = vmor %vm1012, %vm1036
    %vm1045 = vmor %vm1013, %vm1037
    %vm1046 = vmor %vm1014, %vm1038
    %vm1047 = vmor %vm1015, %vm1039
    %vm1048 = vmor %vm1016, %vm1040
    %v1049 = vsel %vm1001, 1, 0
    %v1050 = vsel %vm1002, 1, 0
    %v1051 = vsel %vm1003, 1, 0
    %v1052 = vsel %vm1004, 1, 0
    %v1053 = vsel %vm1005, 1, 0
    %v1054 = vsel %vm1006, 1, 0
    %v1055 = vsel %vm1007, 1, 0
    %v1056 = vsel %vm1008, 1, 0
    %v1057 = vcvt.s32.f32 %v1049
    %v1058 = vcvt.s32.f32 %v1050
    %v1059 = vcvt.s32.f32 %v1051
    %v1060 = vcvt.s32.f32 %v1052
    %v1061 = vcvt.s32.f32 %v1053
    %v1062 = vcvt.s32.f32 %v1054
    %v1063 = vcvt.s32.f32 %v1055
    %v1064 = vcvt.s32.f32 %v1056
    %v1065 = vsel %vm175, %v1057, 0.0
    %1066 = vadd.xlane.f32.xlu0 %v1065
    %v1067 = vpop.xlane.xlu0 %1066
    %v1068 = vsel %vm175, %v1058, 0.0
    %1069 = vadd.xlane.f32.xlu0 %v1068
    %v1070 = vpop.xlane.xlu0 %1069
    %v1071 = vsel %vm175, %v1059, 0.0
    %1072 = vadd.xlane.f32.xlu0 %v1071
    %v1073 = vpop.xlane.xlu0 %1072
    %v1074 = vsel %vm175, %v1060, 0.0
    %1075 = vadd.xlane.f32.xlu0 %v1074
    %v1076 = vpop.xlane.xlu0 %1075
    %v1077 = vsel %vm175, %v1061, 0.0
    %1078 = vadd.xlane.f32.xlu0 %v1077
    %v1079 = vpop.xlane.xlu0 %1078
    %v1080 = vsel %vm175, %v1062, 0.0
    %1081 = vadd.xlane.f32.xlu0 %v1080
    %v1082 = vpop.xlane.xlu0 %1081
    %v1083 = vsel %vm175, %v1063, 0.0
    %1084 = vadd.xlane.f32.xlu0 %v1083
    %v1085 = vpop.xlane.xlu0 %1084
    %v1086 = vsel %vm175, %v1064, 0.0
    %1087 = vadd.xlane.f32.xlu0 %v1086
    %v1088 = vpop.xlane.xlu0 %1087
    %v1089 = vcvt.f32.s32.to.zero.pseudo %v1067
    %v1090 = vcvt.f32.s32.to.zero.pseudo %v1070
    %v1091 = vcvt.f32.s32.to.zero.pseudo %v1073
    %v1092 = vcvt.f32.s32.to.zero.pseudo %v1076
    %v1093 = vcvt.f32.s32.to.zero.pseudo %v1079
    %v1094 = vcvt.f32.s32.to.zero.pseudo %v1082
    %v1095 = vcvt.f32.s32.to.zero.pseudo %v1085
    %v1096 = vcvt.f32.s32.to.zero.pseudo %v1088
    %v1097 = vsel %vm1041, 1, 0
    %v1098 = vsel %vm1042, 1, 0
    %v1099 = vsel %vm1043, 1, 0
    %v1100 = vsel %vm1044, 1, 0
    %v1101 = vsel %vm1045, 1, 0
    %v1102 = vsel %vm1046, 1, 0
    %v1103 = vsel %vm1047, 1, 0
    %v1104 = vsel %vm1048, 1, 0
    %v1105 = vcvt.s32.f32 %v1097
    %v1106 = vcvt.s32.f32 %v1098
    %v1107 = vcvt.s32.f32 %v1099
    %v1108 = vcvt.s32.f32 %v1100
    %v1109 = vcvt.s32.f32 %v1101
    %v1110 = vcvt.s32.f32 %v1102
    %v1111 = vcvt.s32.f32 %v1103
    %v1112 = vcvt.s32.f32 %v1104
    %v1113 = vsel %vm175, %v1105, 0.0
    %v1114 = vsel %vm175, %v1106, 0.0
    %v1115 = vadd.f32 %v1113, %v1114
    %v1116 = vsel %vm175, %v1107, 0.0
    %v1117 = vadd.f32 %v1115, %v1116
    %v1118 = vsel %vm175, %v1108, 0.0
    %v1119 = vadd.f32 %v1117, %v1118
    %v1120 = vsel %vm175, %v1109, 0.0
    %v1121 = vadd.f32 %v1119, %v1120
    %v1122 = vsel %vm175, %v1110, 0.0
    %v1123 = vadd.f32 %v1121, %v1122
    %v1124 = vsel %vm175, %v1111, 0.0
    %v1125 = vadd.f32 %v1123, %v1124
    %v1126 = vsel %vm175, %v1112, 0.0
    %v1127 = vadd.f32 %v1125, %v1126
    %v1128 = vrot.slane %v1127, 4
    %v1129 = vadd.f32 %v1127, %v1128
    %v1130 = vrot.slane %v1129, 2
    %v1131 = vadd.f32 %v1129, %v1130
    %v1132 = vrot.slane %v1131, 1
    %v1133 = vadd.f32 %v1131, %v1132
    %v1134 = vcvt.f32.s32.to.zero.pseudo %v1133
    %v1135 = vadd.s32 %v922, 64
    %vm1136 = vcmp.eq.s32.totalorder %v922, %v1134
    %vm1137 = vcmp.eq.s32.totalorder %v923, %v1134
    %vm1138 = vcmp.eq.s32.totalorder %v924, %v1134
    %vm1139 = vcmp.eq.s32.totalorder %v925, %v1134
    %vm1140 = vcmp.eq.s32.totalorder %v926, %v1134
    %vm1141 = vcmp.eq.s32.totalorder %v927, %v1134
    %vm1142 = vcmp.eq.s32.totalorder %v928, %v1134
    %vm1143 = vcmp.eq.s32.totalorder %v929, %v1134
    %vm1144 = vcmp.eq.s32.totalorder %v1135, %v1134
    %v1145 = vsel %vm1136, 1.0, 0.0
    %v1146 = vsel %vm1137, 1.0, 0.0
    %v1147 = vsel %vm1138, 1.0, 0.0
    %v1148 = vsel %vm1139, 1.0, 0.0
    %v1149 = vsel %vm1140, 1.0, 0.0
    %v1150 = vsel %vm1141, 1.0, 0.0
    %v1151 = vsel %vm1142, 1.0, 0.0
    %v1152 = vsel %vm1143, 1.0, 0.0
    %v1153 = vsel %vm1144, 1.0, 0.0
    %vm1154 = vcmp.eq.s32.totalorder %v931, %v1089
    %vm1155 = vcmp.eq.s32.totalorder %v931, %v1090
    %vm1156 = vcmp.eq.s32.totalorder %v931, %v1091
    %vm1157 = vcmp.eq.s32.totalorder %v931, %v1092
    %vm1158 = vcmp.eq.s32.totalorder %v931, %v1093
    %vm1159 = vcmp.eq.s32.totalorder %v931, %v1094
    %vm1160 = vcmp.eq.s32.totalorder %v931, %v1095
    %vm1161 = vcmp.eq.s32.totalorder %v931, %v1096
    %v1162 = vsel %vm1154, 1.0, 0.0
    %v1163 = vsel %vm1155, 1.0, 0.0
    %v1164 = vsel %vm1156, 1.0, 0.0
    %v1165 = vsel %vm1157, 1.0, 0.0
    %v1166 = vsel %vm1158, 1.0, 0.0
    %v1167 = vsel %vm1159, 1.0, 0.0
    %v1168 = vsel %vm1160, 1.0, 0.0
    %v1169 = vsel %vm1161, 1.0, 0.0
    %v1170 = vmul.f32 %v883, %v753
    %v1171 = vmul.f32 %v888, %v758
    %v1172 = vmul.f32 %v893, %v763
    %v1173 = vmul.f32 %v898, %v768
    %v1174 = vmul.f32 %v903, %v773
    %v1175 = vmul.f32 %v908, %v778
    %v1176 = vmul.f32 %v913, %v783
    %v1177 = vmul.f32 %v918, %v788
    %v1179 = vsel %vm175, %v1145, 0
    %v1182 = vsel %vm175, %v1146, 0
    %v1185 = vsel %vm175, %v1147, 0
    %v1188 = vsel %vm175, %v1148, 0
    %v1191 = vsel %vm175, %v1149, 0
    %v1194 = vsel %vm175, %v1150, 0
    %v1197 = vsel %vm175, %v1151, 0
    %v1200 = vsel %vm175, %v1152, 0
    %v1203 = vsel %vm175, %v1153, 0
    %1205 = vmatprep.subr.mxu0 0.0
    %1206 = vmatpush1.msra.mxu0 0.0
    %1207 = vmatprep.subr.mxu0 0.0
    %1208 = vmatpush1.msra.mxu0 0.0
    %1209 = vmatprep.subr.mxu0 0.0
    %1210 = vmatpush1.msra.mxu0 0.0
    %1211 = vmatprep.subr.mxu0 0.0
    %1212 = vmatpush1.msra.mxu0 0.0
    %1213 = vmatprep.subr.mxu0 0.0
    %1214 = vmatpush1.msra.mxu0 0.0
    %1215 = vmatprep.subr.mxu0 0.0
    %1216 = vmatpush1.msra.mxu0 0.0
    %1217 = vmatprep.subr.mxu0 0.0
    %1218 = vmatpush1.msra.mxu0 0.0
    %1219 = vmatprep.subr.mxu0 0.0
    %1220 = vmatpush1.msra.mxu0 0.0
    %1221 = vmatprep.subr.mxu0 0.0
    %1222 = vmatpush1.msra.mxu0 %v1177
    %1223 = vmatprep.subr.mxu0 0.0
    %1224 = vmatpush1.msra.mxu0 %v1176
    %1225 = vmatprep.subr.mxu0 0.0
    %1226 = vmatpush1.msra.mxu0 %v1175
    %1227 = vmatprep.subr.mxu0 0.0
    %1228 = vmatpush1.msra.mxu0 %v1174
    %1229 = vmatprep.subr.mxu0 0.0
    %1230 = vmatpush1.msra.mxu0 %v1173
    %1231 = vmatprep.subr.mxu0 0.0
    %1232 = vmatpush1.msra.mxu0 %v1172
    %1233 = vmatprep.subr.mxu0 0.0
    %1234 = vmatpush1.msra.mxu0 %v1171
    %1235 = vmatprep.subr.mxu0 0.0
    %1236 = vmatpush1.msra.mxu0 %v1170
    %1237 = vmatprep.subr.mxu0 0.0
    %1238 = vmatpush2.msra.mxu0 0.0
    %1239 = vmatprep.subr.mxu0 0.0
    %1240 = vmatpush2.msra.mxu0 0.0
    %1241 = vmatprep.subr.mxu0 0.0
    %1242 = vmatpush2.msra.mxu0 0.0
    %1243 = vmatprep.subr.mxu0 0.0
    %1244 = vmatpush2.msra.mxu0 0.0
    %1245 = vmatprep.subr.mxu0 0.0
    %1246 = vmatpush2.msra.mxu0 0.0
    %1247 = vmatprep.subr.mxu0 0.0
    %1248 = vmatpush2.msra.mxu0 0.0
    %1249 = vmatprep.subr.mxu0 0.0
    %1250 = vmatpush2.msra.mxu0 0.0
    %1251 = vmatprep.subr.mxu0 0.0
    %1252 = vmatpush2.msra.mxu0 0.0
    %1253 = vmatprep.subr.mxu0 0.0
    %1254 = vmatpush2.msra.mxu0 0.0
    %1255 = vmatprep.subr.mxu0 0.0
    %1256 = vmatpush2.msra.mxu0 0.0
    %1257 = vmatprep.subr.mxu0 0.0
    %1258 = vmatpush2.msra.mxu0 0.0
    %1259 = vmatprep.subr.mxu0 0.0
    %1260 = vmatpush2.msra.mxu0 0.0
    %1261 = vmatprep.subr.mxu0 0.0
    %1262 = vmatpush2.msra.mxu0 0.0
    %1263 = vmatprep.subr.mxu0 0.0
    %1264 = vmatpush2.msra.mxu0 0.0
    %1265 = vmatprep.subr.mxu0 0.0
    %1266 = vmatpush2.msra.mxu0 0.0
    %1267 = vmatprep.subr.mxu0 0.0
    %1268 = vmatpush2.msra.mxu0 0.0
    %1269 = vmatprep.mubr.f32.mxu0 0.0
    %1270 = vmatmul.mubr.f32.gmra.mxu0 %v1179
    %v1271 = vpop.f32.mrf.mxu0
    %v1272 = vadd.f32 0.0, %v1271
    %v1273 = vpop.f32.mrf.mxu0
    %1274 = vmatprep.mubr.f32.mxu0 0.0
    %1275 = vmatmul.mubr.f32.gmra.mxu0 %v1182
    %v1276 = vpop.f32.mrf.mxu0
    %v1277 = vadd.f32 0.0, %v1276
    %v1278 = vpop.f32.mrf.mxu0
    %1279 = vmatprep.mubr.f32.mxu0 0.0
    %1280 = vmatmul.mubr.f32.gmra.mxu0 %v1185
    %v1281 = vpop.f32.mrf.mxu0
    %v1282 = vadd.f32 0.0, %v1281
    %v1283 = vpop.f32.mrf.mxu0
    %1284 = vmatprep.mubr.f32.mxu0 0.0
    %1285 = vmatmul.mubr.f32.gmra.mxu0 %v1188
    %v1286 = vpop.f32.mrf.mxu0
    %v1287 = vadd.f32 0.0, %v1286
    %v1288 = vpop.f32.mrf.mxu0
    %1289 = vmatprep.mubr.f32.mxu0 0.0
    %1290 = vmatmul.mubr.f32.gmra.mxu0 %v1191
    %v1291 = vpop.f32.mrf.mxu0
    %v1292 = vadd.f32 0.0, %v1291
    %v1293 = vpop.f32.mrf.mxu0
    %1294 = vmatprep.mubr.f32.mxu0 0.0
    %1295 = vmatmul.mubr.f32.gmra.mxu0 %v1194
    %v1296 = vpop.f32.mrf.mxu0
    %v1297 = vadd.f32 0.0, %v1296
    %v1298 = vpop.f32.mrf.mxu0
    %1299 = vmatprep.mubr.f32.mxu0 0.0
    %1300 = vmatmul.mubr.f32.gmra.mxu0 %v1197
    %v1301 = vpop.f32.mrf.mxu0
    %v1302 = vadd.f32 0.0, %v1301
    %v1303 = vpop.f32.mrf.mxu0
    %1304 = vmatprep.mubr.f32.mxu0 0.0
    %1305 = vmatmul.mubr.f32.gmra.mxu0 %v1200
    %v1306 = vpop.f32.mrf.mxu0
    %v1307 = vadd.f32 0.0, %v1306
    %v1308 = vpop.f32.mrf.mxu0
    %1309 = vmatprep.mubr.f32.mxu0 0.0
    %1310 = vmatmul.mubr.f32.gmra.mxu0 %v1203
    %v1311 = vpop.f32.mrf.mxu0
    %v1312 = vadd.f32 0.0, %v1311
    %v1313 = vpop.f32.mrf.mxu0
    %1314 = vdwg.mxu0
    %s1315 = scalar_lea.vmem [#allocation2], 640
    %v1316 = vld [vmem:[%s1315] sm:$0xff]
    %v1317 = vld [vmem:[%s1315 + $0x8] sm:$0xff]
    %v1318 = vld [vmem:[%s1315 + $0x10] sm:$0xff]
    %v1319 = vld [vmem:[%s1315 + $0x18] sm:$0xff]
    %v1320 = vld [vmem:[%s1315 + $0x20] sm:$0xff]
    %v1321 = vld [vmem:[%s1315 + $0x28] sm:$0xff]
    %v1322 = vld [vmem:[%s1315 + $0x30] sm:$0xff]
    %v1323 = vld [vmem:[%s1315 + $0x38] sm:$0xff]
    %v1324 = vld [vmem:[%s1315 + $0x40] sm:$0xff]
    %v1325 = vld [vmem:[%s1315 + $0x48] sm:$0xff]
    %v1326 = vld [vmem:[%s1315 + $0x50] sm:$0xff]
    %v1327 = vld [vmem:[%s1315 + $0x58] sm:$0xff]
    %v1328 = vld [vmem:[%s1315 + $0x60] sm:$0xff]
    %v1329 = vld [vmem:[%s1315 + $0x68] sm:$0xff]
    %v1330 = vld [vmem:[%s1315 + $0x70] sm:$0xff]
    %v1331 = vld [vmem:[%s1315 + $0x78] sm:$0xff]
    %v1332 = vrot.slane %v1272, 7
    %v1333 = vrot.slane %v1277, 7
    %v1334 = vrot.slane %v1282, 7
    %v1335 = vrot.slane %v1287, 7
    %v1336 = vrot.slane %v1292, 7
    %v1337 = vrot.slane %v1297, 7
    %v1338 = vrot.slane %v1302, 7
    %v1339 = vrot.slane %v1307, 7
    %v1340 = vrot.slane %v1312, 7
    %vm1341 = vcmp.lt.s32.totalorder %v922, 1
    %v1342 = vsel %vm1341, %v1339, %v1340
    %v1343 = vsel %vm1341, %v1338, %v1339
    %v1344 = vsel %vm1341, %v1337, %v1338
    %v1345 = vsel %vm1341, %v1336, %v1337
    %v1346 = vsel %vm1341, %v1335, %v1336
    %v1347 = vsel %vm1341, %v1334, %v1335
    %v1348 = vsel %vm1341, %v1333, %v1334
    %v1349 = vsel %vm1341, %v1332, %v1333
    %v1350 = vsel %vm1341, %v1340, %v1332
    %s1351 = scalar_lea.vmem [#allocation2], 512
    %v1352 = vld [vmem:[%s1351] sm:$0xff]
    %v1353 = vld [vmem:[%s1351 + $0x8] sm:$0xff]
    %v1354 = vld [vmem:[%s1351 + $0x10] sm:$0xff]
    %v1355 = vld [vmem:[%s1351 + $0x18] sm:$0xff]
    %v1356 = vld [vmem:[%s1351 + $0x20] sm:$0xff]
    %v1357 = vld [vmem:[%s1351 + $0x28] sm:$0xff]
    %v1358 = vld [vmem:[%s1351 + $0x30] sm:$0xff]
    %v1359 = vld [vmem:[%s1351 + $0x38] sm:$0xff]
    %v1360 = vld [vmem:[%s1351 + $0x40] sm:$0xff]
    %v1361 = vld [vmem:[%s1351 + $0x48] sm:$0xff]
    %v1362 = vld [vmem:[%s1351 + $0x50] sm:$0xff]
    %v1363 = vld [vmem:[%s1351 + $0x58] sm:$0xff]
    %v1364 = vld [vmem:[%s1351 + $0x60] sm:$0xff]
    %v1365 = vld [vmem:[%s1351 + $0x68] sm:$0xff]
    %v1366 = vld [vmem:[%s1351 + $0x70] sm:$0xff]
    %v1367 = vld [vmem:[%s1351 + $0x78] sm:$0xff]
    %1368 = vmatprep.subr.mxu0 0.0
    %1369 = vmatpush1.msra.mxu0 %v1367
    %1370 = vmatprep.subr.mxu0 0.0
    %1371 = vmatpush1.msra.mxu0 %v1366
    %1372 = vmatprep.subr.mxu0 0.0
    %1373 = vmatpush1.msra.mxu0 %v1365
    %1374 = vmatprep.subr.mxu0 0.0
    %1375 = vmatpush1.msra.mxu0 %v1364
    %1376 = vmatprep.subr.mxu0 0.0
    %1377 = vmatpush1.msra.mxu0 %v1363
    %1378 = vmatprep.subr.mxu0 0.0
    %1379 = vmatpush1.msra.mxu0 %v1362
    %1380 = vmatprep.subr.mxu0 0.0
    %1381 = vmatpush1.msra.mxu0 %v1361
    %1382 = vmatprep.subr.mxu0 0.0
    %1383 = vmatpush1.msra.mxu0 %v1360
    %1384 = vmatprep.subr.mxu0 0.0
    %1385 = vmatpush1.msra.mxu0 %v1359
    %1386 = vmatprep.subr.mxu0 0.0
    %1387 = vmatpush1.msra.mxu0 %v1358
    %1388 = vmatprep.subr.mxu0 0.0
    %1389 = vmatpush1.msra.mxu0 %v1357
    %1390 = vmatprep.subr.mxu0 0.0
    %1391 = vmatpush1.msra.mxu0 %v1356
    %1392 = vmatprep.subr.mxu0 0.0
    %1393 = vmatpush1.msra.mxu0 %v1355
    %1394 = vmatprep.subr.mxu0 0.0
    %1395 = vmatpush1.msra.mxu0 %v1354
    %1396 = vmatprep.subr.mxu0 0.0
    %1397 = vmatpush1.msra.mxu0 %v1353
    %1398 = vmatprep.subr.mxu0 0.0
    %1399 = vmatpush1.msra.mxu0 %v1352
    %1400 = vmatprep.subr.mxu0 0.0
    %1401 = vmatpush2.msra.mxu0 0.0
    %1402 = vmatprep.subr.mxu0 0.0
    %1403 = vmatpush2.msra.mxu0 0.0
    %1404 = vmatprep.subr.mxu0 0.0
    %1405 = vmatpush2.msra.mxu0 0.0
    %1406 = vmatprep.subr.mxu0 0.0
    %1407 = vmatpush2.msra.mxu0 0.0
    %1408 = vmatprep.subr.mxu0 0.0
    %1409 = vmatpush2.msra.mxu0 0.0
    %1410 = vmatprep.subr.mxu0 0.0
    %1411 = vmatpush2.msra.mxu0 0.0
    %1412 = vmatprep.subr.mxu0 0.0
    %1413 = vmatpush2.msra.mxu0 0.0
    %1414 = vmatprep.subr.mxu0 0.0
    %1415 = vmatpush2.msra.mxu0 0.0
    %1416 = vmatprep.subr.mxu0 0.0
    %1417 = vmatpush2.msra.mxu0 0.0
    %1418 = vmatprep.subr.mxu0 0.0
    %1419 = vmatpush2.msra.mxu0 0.0
    %1420 = vmatprep.subr.mxu0 0.0
    %1421 = vmatpush2.msra.mxu0 0.0
    %1422 = vmatprep.subr.mxu0 0.0
    %1423 = vmatpush2.msra.mxu0 0.0
    %1424 = vmatprep.subr.mxu0 0.0
    %1425 = vmatpush2.msra.mxu0 0.0
    %1426 = vmatprep.subr.mxu0 0.0
    %1427 = vmatpush2.msra.mxu0 0.0
    %1428 = vmatprep.subr.mxu0 0.0
    %1429 = vmatpush2.msra.mxu0 0.0
    %1430 = vmatprep.subr.mxu0 0.0
    %1431 = vmatpush2.msra.mxu0 0.0
    %1432 = vmatprep.mubr.f32.mxu0 0.0
    %1433 = vmatmul.mubr.f32.gmra.mxu0 %v1350
    %v1434 = vpop.f32.mrf.mxu0
    %v1435 = vadd.f32 0.0, %v1434
    %v1436 = vpop.f32.mrf.mxu0
    %1437 = vmatprep.mubr.f32.mxu0 0.0
    %1438 = vmatmul.mubr.f32.gmra.mxu0 %v1349
    %v1439 = vpop.f32.mrf.mxu0
    %v1440 = vadd.f32 0.0, %v1439
    %v1441 = vpop.f32.mrf.mxu0
    %1442 = vmatprep.mubr.f32.mxu0 0.0
    %1443 = vmatmul.mubr.f32.gmra.mxu0 %v1348
    %v1444 = vpop.f32.mrf.mxu0
    %v1445 = vadd.f32 0.0, %v1444
    %v1446 = vpop.f32.mrf.mxu0
    %1447 = vmatprep.mubr.f32.mxu0 0.0
    %1448 = vmatmul.mubr.f32.gmra.mxu0 %v1347
    %v1449 = vpop.f32.mrf.mxu0
    %v1450 = vadd.f32 0.0, %v1449
    %v1451 = vpop.f32.mrf.mxu0
    %1452 = vmatprep.mubr.f32.mxu0 0.0
    %1453 = vmatmul.mubr.f32.gmra.mxu0 %v1346
    %v1454 = vpop.f32.mrf.mxu0
    %v1455 = vadd.f32 0.0, %v1454
    %v1456 = vpop.f32.mrf.mxu0
    %1457 = vmatprep.mubr.f32.mxu0 0.0
    %1458 = vmatmul.mubr.f32.gmra.mxu0 %v1345
    %v1459 = vpop.f32.mrf.mxu0
    %v1460 = vadd.f32 0.0, %v1459
    %v1461 = vpop.f32.mrf.mxu0
    %1462 = vmatprep.mubr.f32.mxu0 0.0
    %1463 = vmatmul.mubr.f32.gmra.mxu0 %v1344
    %v1464 = vpop.f32.mrf.mxu0
    %v1465 = vadd.f32 0.0, %v1464
    %v1466 = vpop.f32.mrf.mxu0
    %1467 = vmatprep.mubr.f32.mxu0 0.0
    %1468 = vmatmul.mubr.f32.gmra.mxu0 %v1343
    %v1469 = vpop.f32.mrf.mxu0
    %v1470 = vadd.f32 0.0, %v1469
    %v1471 = vpop.f32.mrf.mxu0
    %1472 = vmatprep.mubr.f32.mxu0 0.0
    %1473 = vmatmul.mubr.f32.gmra.mxu0 %v1342
    %v1474 = vpop.f32.mrf.mxu0
    %v1475 = vadd.f32 0.0, %v1474
    %v1476 = vpop.f32.mrf.mxu0
    %1477 = vdwg.mxu0
    %1478 = vmatprep.subr.mxu0 0.0
    %1479 = vmatpush1.msra.mxu0 %v1331
    %1480 = vmatprep.subr.mxu0 0.0
    %1481 = vmatpush1.msra.mxu0 %v1330
    %1482 = vmatprep.subr.mxu0 0.0
    %1483 = vmatpush1.msra.mxu0 %v1329
    %1484 = vmatprep.subr.mxu0 0.0
    %1485 = vmatpush1.msra.mxu0 %v1328
    %1486 = vmatprep.subr.mxu0 0.0
    %1487 = vmatpush1.msra.mxu0 %v1327
    %1488 = vmatprep.subr.mxu0 0.0
    %1489 = vmatpush1.msra.mxu0 %v1326
    %1490 = vmatprep.subr.mxu0 0.0
    %1491 = vmatpush1.msra.mxu0 %v1325
    %1492 = vmatprep.subr.mxu0 0.0
    %1493 = vmatpush1.msra.mxu0 %v1324
    %1494 = vmatprep.subr.mxu0 0.0
    %1495 = vmatpush1.msra.mxu0 %v1323
    %1496 = vmatprep.subr.mxu0 0.0
    %1497 = vmatpush1.msra.mxu0 %v1322
    %1498 = vmatprep.subr.mxu0 0.0
    %1499 = vmatpush1.msra.mxu0 %v1321
    %1500 = vmatprep.subr.mxu0 0.0
    %1501 = vmatpush1.msra.mxu0 %v1320
    %1502 = vmatprep.subr.mxu0 0.0
    %1503 = vmatpush1.msra.mxu0 %v1319
    %1504 = vmatprep.subr.mxu0 0.0
    %1505 = vmatpush1.msra.mxu0 %v1318
    %1506 = vmatprep.subr.mxu0 0.0
    %1507 = vmatpush1.msra.mxu0 %v1317
    %1508 = vmatprep.subr.mxu0 0.0
    %1509 = vmatpush1.msra.mxu0 %v1316
    %1510 = vmatprep.subr.mxu0 0.0
    %1511 = vmatpush2.msra.mxu0 0.0
    %1512 = vmatprep.subr.mxu0 0.0
    %1513 = vmatpush2.msra.mxu0 0.0
    %1514 = vmatprep.subr.mxu0 0.0
    %1515 = vmatpush2.msra.mxu0 0.0
    %1516 = vmatprep.subr.mxu0 0.0
    %1517 = vmatpush2.msra.mxu0 0.0
    %1518 = vmatprep.subr.mxu0 0.0
    %1519 = vmatpush2.msra.mxu0 0.0
    %1520 = vmatprep.subr.mxu0 0.0
    %1521 = vmatpush2.msra.mxu0 0.0
    %1522 = vmatprep.subr.mxu0 0.0
    %1523 = vmatpush2.msra.mxu0 0.0
    %1524 = vmatprep.subr.mxu0 0.0
    %1525 = vmatpush2.msra.mxu0 0.0
    %1526 = vmatprep.subr.mxu0 0.0
    %1527 = vmatpush2.msra.mxu0 0.0
    %1528 = vmatprep.subr.mxu0 0.0
    %1529 = vmatpush2.msra.mxu0 0.0
    %1530 = vmatprep.subr.mxu0 0.0
    %1531 = vmatpush2.msra.mxu0 0.0
    %1532 = vmatprep.subr.mxu0 0.0
    %1533 = vmatpush2.msra.mxu0 0.0
    %1534 = vmatprep.subr.mxu0 0.0
    %1535 = vmatpush2.msra.mxu0 0.0
    %1536 = vmatprep.subr.mxu0 0.0
    %1537 = vmatpush2.msra.mxu0 0.0
    %1538 = vmatprep.subr.mxu0 0.0
    %1539 = vmatpush2.msra.mxu0 0.0
    %1540 = vmatprep.subr.mxu0 0.0
    %1541 = vmatpush2.msra.mxu0 0.0
    %1542 = vmatprep.mubr.f32.mxu0 0.0
    %1543 = vmatmul.mubr.f32.gmra.mxu0 %v1272
    %v1544 = vpop.f32.mrf.mxu0
    %v1545 = vadd.f32 %v1435, %v1544
    %v1546 = vpop.f32.mrf.mxu0
    %1547 = vmatprep.mubr.f32.mxu0 0.0
    %1548 = vmatmul.mubr.f32.gmra.mxu0 %v1277
    %v1549 = vpop.f32.mrf.mxu0
    %v1550 = vadd.f32 %v1440, %v1549
    %v1551 = vpop.f32.mrf.mxu0
    %1552 = vmatprep.mubr.f32.mxu0 0.0
    %1553 = vmatmul.mubr.f32.gmra.mxu0 %v1282
    %v1554 = vpop.f32.mrf.mxu0
    %v1555 = vadd.f32 %v1445, %v1554
    %v1556 = vpop.f32.mrf.mxu0
    %1557 = vmatprep.mubr.f32.mxu0 0.0
    %1558 = vmatmul.mubr.f32.gmra.mxu0 %v1287
    %v1559 = vpop.f32.mrf.mxu0
    %v1560 = vadd.f32 %v1450, %v1559
    %v1561 = vpop.f32.mrf.mxu0
    %1562 = vmatprep.mubr.f32.mxu0 0.0
    %1563 = vmatmul.mubr.f32.gmra.mxu0 %v1292
    %v1564 = vpop.f32.mrf.mxu0
    %v1565 = vadd.f32 %v1455, %v1564
    %v1566 = vpop.f32.mrf.mxu0
    %1567 = vmatprep.mubr.f32.mxu0 0.0
    %1568 = vmatmul.mubr.f32.gmra.mxu0 %v1297
    %v1569 = vpop.f32.mrf.mxu0
    %v1570 = vadd.f32 %v1460, %v1569
    %v1571 = vpop.f32.mrf.mxu0
    %1572 = vmatprep.mubr.f32.mxu0 0.0
    %1573 = vmatmul.mubr.f32.gmra.mxu0 %v1302
    %v1574 = vpop.f32.mrf.mxu0
    %v1575 = vadd.f32 %v1465, %v1574
    %v1576 = vpop.f32.mrf.mxu0
    %1577 = vmatprep.mubr.f32.mxu0 0.0
    %1578 = vmatmul.mubr.f32.gmra.mxu0 %v1307
    %v1579 = vpop.f32.mrf.mxu0
    %v1580 = vadd.f32 %v1470, %v1579
    %v1581 = vpop.f32.mrf.mxu0
    %1582 = vmatprep.mubr.f32.mxu0 0.0
    %1583 = vmatmul.mubr.f32.gmra.mxu0 %v1312
    %v1584 = vpop.f32.mrf.mxu0
    %v1585 = vadd.f32 %v1475, %v1584
    %v1586 = vpop.f32.mrf.mxu0
    %1587 = vdwg.mxu0
    %v1588 = vrot.slane %v1272, 1
    %v1589 = vrot.slane %v1277, 1
    %v1590 = vrot.slane %v1282, 1
    %v1591 = vrot.slane %v1287, 1
    %v1592 = vrot.slane %v1292, 1
    %v1593 = vrot.slane %v1297, 1
    %v1594 = vrot.slane %v1302, 1
    %v1595 = vrot.slane %v1307, 1
    %v1596 = vrot.slane %v1312, 1
    %vm1597 = vcmp.lt.s32.totalorder %v922, 7
    %v1598 = vsel %vm1597, %v1595, %v1596
    %v1599 = vsel %vm1597, %v1594, %v1595
    %v1600 = vsel %vm1597, %v1593, %v1594
    %v1601 = vsel %vm1597, %v1592, %v1593
    %v1602 = vsel %vm1597, %v1591, %v1592
    %v1603 = vsel %vm1597, %v1590, %v1591
    %v1604 = vsel %vm1597, %v1589, %v1590
    %v1605 = vsel %vm1597, %v1588, %v1589
    %v1606 = vsel %vm1597, %v1596, %v1588
    %s1607 = scalar_lea.vmem [#allocation2], 768
    %v1608 = vld [vmem:[%s1607] sm:$0xff]
    %v1609 = vld [vmem:[%s1607 + $0x8] sm:$0xff]
    %v1610 = vld [vmem:[%s1607 + $0x10] sm:$0xff]
    %v1611 = vld [vmem:[%s1607 + $0x18] sm:$0xff]
    %v1612 = vld [vmem:[%s1607 + $0x20] sm:$0xff]
    %v1613 = vld [vmem:[%s1607 + $0x28] sm:$0xff]
    %v1614 = vld [vmem:[%s1607 + $0x30] sm:$0xff]
    %v1615 = vld [vmem:[%s1607 + $0x38] sm:$0xff]
    %v1616 = vld [vmem:[%s1607 + $0x40] sm:$0xff]
    %v1617 = vld [vmem:[%s1607 + $0x48] sm:$0xff]
    %v1618 = vld [vmem:[%s1607 + $0x50] sm:$0xff]
    %v1619 = vld [vmem:[%s1607 + $0x58] sm:$0xff]
    %v1620 = vld [vmem:[%s1607 + $0x60] sm:$0xff]
    %v1621 = vld [vmem:[%s1607 + $0x68] sm:$0xff]
    %v1622 = vld [vmem:[%s1607 + $0x70] sm:$0xff]
    %v1623 = vld [vmem:[%s1607 + $0x78] sm:$0xff]
    %1624 = vmatprep.subr.mxu0 0.0
    %1625 = vmatpush1.msra.mxu0 %v1623
    %1626 = vmatprep.subr.mxu0 0.0
    %1627 = vmatpush1.msra.mxu0 %v1622
    %1628 = vmatprep.subr.mxu0 0.0
    %1629 = vmatpush1.msra.mxu0 %v1621
    %1630 = vmatprep.subr.mxu0 0.0
    %1631 = vmatpush1.msra.mxu0 %v1620
    %1632 = vmatprep.subr.mxu0 0.0
    %1633 = vmatpush1.msra.mxu0 %v1619
    %1634 = vmatprep.subr.mxu0 0.0
    %1635 = vmatpush1.msra.mxu0 %v1618
    %1636 = vmatprep.subr.mxu0 0.0
    %1637 = vmatpush1.msra.mxu0 %v1617
    %1638 = vmatprep.subr.mxu0 0.0
    %1639 = vmatpush1.msra.mxu0 %v1616
    %1640 = vmatprep.subr.mxu0 0.0
    %1641 = vmatpush1.msra.mxu0 %v1615
    %1642 = vmatprep.subr.mxu0 0.0
    %1643 = vmatpush1.msra.mxu0 %v1614
    %1644 = vmatprep.subr.mxu0 0.0
    %1645 = vmatpush1.msra.mxu0 %v1613
    %1646 = vmatprep.subr.mxu0 0.0
    %1647 = vmatpush1.msra.mxu0 %v1612
    %1648 = vmatprep.subr.mxu0 0.0
    %1649 = vmatpush1.msra.mxu0 %v1611
    %1650 = vmatprep.subr.mxu0 0.0
    %1651 = vmatpush1.msra.mxu0 %v1610
    %1652 = vmatprep.subr.mxu0 0.0
    %1653 = vmatpush1.msra.mxu0 %v1609
    %1654 = vmatprep.subr.mxu0 0.0
    %1655 = vmatpush1.msra.mxu0 %v1608
    %1656 = vmatprep.subr.mxu0 0.0
    %1657 = vmatpush2.msra.mxu0 0.0
    %1658 = vmatprep.subr.mxu0 0.0
    %1659 = vmatpush2.msra.mxu0 0.0
    %1660 = vmatprep.subr.mxu0 0.0
    %1661 = vmatpush2.msra.mxu0 0.0
    %1662 = vmatprep.subr.mxu0 0.0
    %1663 = vmatpush2.msra.mxu0 0.0
    %1664 = vmatprep.subr.mxu0 0.0
    %1665 = vmatpush2.msra.mxu0 0.0
    %1666 = vmatprep.subr.mxu0 0.0
    %1667 = vmatpush2.msra.mxu0 0.0
    %1668 = vmatprep.subr.mxu0 0.0
    %1669 = vmatpush2.msra.mxu0 0.0
    %1670 = vmatprep.subr.mxu0 0.0
    %1671 = vmatpush2.msra.mxu0 0.0
    %1672 = vmatprep.subr.mxu0 0.0
    %1673 = vmatpush2.msra.mxu0 0.0
    %1674 = vmatprep.subr.mxu0 0.0
    %1675 = vmatpush2.msra.mxu0 0.0
    %1676 = vmatprep.subr.mxu0 0.0
    %1677 = vmatpush2.msra.mxu0 0.0
    %1678 = vmatprep.subr.mxu0 0.0
    %1679 = vmatpush2.msra.mxu0 0.0
    %1680 = vmatprep.subr.mxu0 0.0
    %1681 = vmatpush2.msra.mxu0 0.0
    %1682 = vmatprep.subr.mxu0 0.0
    %1683 = vmatpush2.msra.mxu0 0.0
    %1684 = vmatprep.subr.mxu0 0.0
    %1685 = vmatpush2.msra.mxu0 0.0
    %1686 = vmatprep.subr.mxu0 0.0
    %1687 = vmatpush2.msra.mxu0 0.0
    %1688 = vmatprep.mubr.f32.mxu0 0.0
    %1689 = vmatmul.mubr.f32.gmra.mxu0 %v1605
    %v1690 = vpop.f32.mrf.mxu0
    %v1691 = vadd.f32 0.0, %v1690
    %v1692 = vpop.f32.mrf.mxu0
    %1693 = vmatprep.mubr.f32.mxu0 0.0
    %1694 = vmatmul.mubr.f32.gmra.mxu0 %v1604
    %v1695 = vpop.f32.mrf.mxu0
    %v1696 = vadd.f32 0.0, %v1695
    %v1697 = vpop.f32.mrf.mxu0
    %1698 = vmatprep.mubr.f32.mxu0 0.0
    %1699 = vmatmul.mubr.f32.gmra.mxu0 %v1603
    %v1700 = vpop.f32.mrf.mxu0
    %v1701 = vadd.f32 0.0, %v1700
    %v1702 = vpop.f32.mrf.mxu0
    %1703 = vmatprep.mubr.f32.mxu0 0.0
    %1704 = vmatmul.mubr.f32.gmra.mxu0 %v1602
    %v1705 = vpop.f32.mrf.mxu0
    %v1706 = vadd.f32 0.0, %v1705
    %v1707 = vpop.f32.mrf.mxu0
    %1708 = vmatprep.mubr.f32.mxu0 0.0
    %1709 = vmatmul.mubr.f32.gmra.mxu0 %v1601
    %v1710 = vpop.f32.mrf.mxu0
    %v1711 = vadd.f32 0.0, %v1710
    %v1712 = vpop.f32.mrf.mxu0
    %1713 = vmatprep.mubr.f32.mxu0 0.0
    %1714 = vmatmul.mubr.f32.gmra.mxu0 %v1600
    %v1715 = vpop.f32.mrf.mxu0
    %v1716 = vadd.f32 0.0, %v1715
    %v1717 = vpop.f32.mrf.mxu0
    %1718 = vmatprep.mubr.f32.mxu0 0.0
    %1719 = vmatmul.mubr.f32.gmra.mxu0 %v1599
    %v1720 = vpop.f32.mrf.mxu0
    %v1721 = vadd.f32 0.0, %v1720
    %v1722 = vpop.f32.mrf.mxu0
    %1723 = vmatprep.mubr.f32.mxu0 0.0
    %1724 = vmatmul.mubr.f32.gmra.mxu0 %v1598
    %v1725 = vpop.f32.mrf.mxu0
    %v1726 = vadd.f32 0.0, %v1725
    %v1727 = vpop.f32.mrf.mxu0
    %1728 = vmatprep.mubr.f32.mxu0 0.0
    %1729 = vmatmul.mubr.f32.gmra.mxu0 %v1606
    %v1730 = vpop.f32.mrf.mxu0
    %v1731 = vadd.f32 0.0, %v1730
    %v1732 = vpop.f32.mrf.mxu0
    %1733 = vdwg.mxu0
    %v1734 = vadd.f32 %v1545, %v1691
    %v1735 = vadd.f32 %v1550, %v1696
    %v1736 = vadd.f32 %v1555, %v1701
    %v1737 = vadd.f32 %v1560, %v1706
    %v1738 = vadd.f32 %v1565, %v1711
    %v1739 = vadd.f32 %v1570, %v1716
    %v1740 = vadd.f32 %v1575, %v1721
    %v1741 = vadd.f32 %v1580, %v1726
    %v1742 = vadd.f32 %v1585, %v1731
    %s1743 = scalar_lea.vmem %s3, 4
    %v1744 = vld [vmem:[%s1743] sm:$0x1]
    %v1746 = vlaneseq
    %v1747 = vshrl.u32 %v1746, 7
    %v1748 = vsub.s32 0, %v1747
    %v1749 = vrot.slane %v1744, %v1748
    %v1751 = vadd.f32 %v1734, %v1749
    %v1752 = vadd.f32 %v1735, %v1749
    %v1753 = vadd.f32 %v1736, %v1749
    %v1754 = vadd.f32 %v1737, %v1749
    %v1755 = vadd.f32 %v1738, %v1749
    %v1756 = vadd.f32 %v1739, %v1749
    %v1757 = vadd.f32 %v1740, %v1749
    %v1758 = vadd.f32 %v1741, %v1749
    %v1759 = vadd.f32 %v1742, %v1749
    %v1760 = vmax.f32 %v1751, 0.0
    %v1761 = vmax.f32 %v1752, 0.0
    %v1762 = vmax.f32 %v1753, 0.0
    %v1763 = vmax.f32 %v1754, 0.0
    %v1764 = vmax.f32 %v1755, 0.0
    %v1765 = vmax.f32 %v1756, 0.0
    %v1766 = vmax.f32 %v1757, 0.0
    %v1767 = vmax.f32 %v1758, 0.0
    %v1768 = vmax.f32 %v1759, 0.0
    %vm1769 = vcmp.lt.s32.totalorder %v922, 64
    %vm1770 = vcmp.lt.s32.totalorder %v923, 64
    %vm1771 = vcmp.lt.s32.totalorder %v924, 64
    %vm1772 = vcmp.lt.s32.totalorder %v925, 64
    %vm1773 = vcmp.lt.s32.totalorder %v926, 64
    %vm1774 = vcmp.lt.s32.totalorder %v927, 64
    %vm1775 = vcmp.lt.s32.totalorder %v928, 64
    %vm1776 = vcmp.lt.s32.totalorder %v929, 64
    %vm1777 = vcmp.lt.s32.totalorder %v1135, 64
    %v1778 = vsel %vm1769, %v1760, 0.0
    %v1779 = vsel %vm1770, %v1761, 0.0
    %v1780 = vsel %vm1771, %v1762, 0.0
    %v1781 = vsel %vm1772, %v1763, 0.0
    %v1782 = vsel %vm1773, %v1764, 0.0
    %v1783 = vsel %vm1774, %v1765, 0.0
    %v1784 = vsel %vm1775, %v1766, 0.0
    %v1785 = vsel %vm1776, %v1767, 0.0
    %v1786 = vsel %vm1777, %v1768, 0.0
    %s1787 = scalar_lea.vmem [#allocation2], 1024
    %v1788 = vld [vmem:[%s1787] sm:$0xff]
    %v1789 = vld [vmem:[%s1787 + $0x8] sm:$0xff]
    %v1790 = vld [vmem:[%s1787 + $0x10] sm:$0xff]
    %v1791 = vld [vmem:[%s1787 + $0x18] sm:$0xff]
    %v1792 = vld [vmem:[%s1787 + $0x20] sm:$0xff]
    %v1793 = vld [vmem:[%s1787 + $0x28] sm:$0xff]
    %v1794 = vld [vmem:[%s1787 + $0x30] sm:$0xff]
    %v1795 = vld [vmem:[%s1787 + $0x38] sm:$0xff]
    %v1796 = vld [vmem:[%s1787 + $0x40] sm:$0xff]
    %v1797 = vld [vmem:[%s1787 + $0x48] sm:$0xff]
    %v1798 = vld [vmem:[%s1787 + $0x50] sm:$0xff]
    %v1799 = vld [vmem:[%s1787 + $0x58] sm:$0xff]
    %v1800 = vld [vmem:[%s1787 + $0x60] sm:$0xff]
    %v1801 = vld [vmem:[%s1787 + $0x68] sm:$0xff]
    %v1802 = vld [vmem:[%s1787 + $0x70] sm:$0xff]
    %v1803 = vld [vmem:[%s1787 + $0x78] sm:$0xff]
    %v1804 = vrot.slane %v1778, 7
    %v1805 = vrot.slane %v1779, 7
    %v1806 = vrot.slane %v1780, 7
    %v1807 = vrot.slane %v1781, 7
    %v1808 = vrot.slane %v1782, 7
    %v1809 = vrot.slane %v1783, 7
    %v1810 = vrot.slane %v1784, 7
    %v1811 = vrot.slane %v1785, 7
    %v1812 = vrot.slane %v1786, 7
    %v1813 = vsel %vm1341, %v1811, %v1812
    %v1814 = vsel %vm1341, %v1810, %v1811
    %v1815 = vsel %vm1341, %v1809, %v1810
    %v1816 = vsel %vm1341, %v1808, %v1809
    %v1817 = vsel %vm1341, %v1807, %v1808
    %v1818 = vsel %vm1341, %v1806, %v1807
    %v1819 = vsel %vm1341, %v1805, %v1806
    %v1820 = vsel %vm1341, %v1804, %v1805
    %v1821 = vsel %vm1341, %v1812, %v1804
    %s1822 = scalar_lea.vmem [#allocation2], 896
    %v1823 = vld [vmem:[%s1822] sm:$0xff]
    %v1824 = vld [vmem:[%s1822 + $0x8] sm:$0xff]
    %v1825 = vld [vmem:[%s1822 + $0x10] sm:$0xff]
    %v1826 = vld [vmem:[%s1822 + $0x18] sm:$0xff]
    %v1827 = vld [vmem:[%s1822 + $0x20] sm:$0xff]
    %v1828 = vld [vmem:[%s1822 + $0x28] sm:$0xff]
    %v1829 = vld [vmem:[%s1822 + $0x30] sm:$0xff]
    %v1830 = vld [vmem:[%s1822 + $0x38] sm:$0xff]
    %v1831 = vld [vmem:[%s1822 + $0x40] sm:$0xff]
    %v1832 = vld [vmem:[%s1822 + $0x48] sm:$0xff]
    %v1833 = vld [vmem:[%s1822 + $0x50] sm:$0xff]
    %v1834 = vld [vmem:[%s1822 + $0x58] sm:$0xff]
    %v1835 = vld [vmem:[%s1822 + $0x60] sm:$0xff]
    %v1836 = vld [vmem:[%s1822 + $0x68] sm:$0xff]
    %v1837 = vld [vmem:[%s1822 + $0x70] sm:$0xff]
    %v1838 = vld [vmem:[%s1822 + $0x78] sm:$0xff]
    %1839 = vmatprep.subr.mxu0 0.0
    %1840 = vmatpush1.msra.mxu0 %v1838
    %1841 = vmatprep.subr.mxu0 0.0
    %1842 = vmatpush1.msra.mxu0 %v1837
    %1843 = vmatprep.subr.mxu0 0.0
    %1844 = vmatpush1.msra.mxu0 %v1836
    %1845 = vmatprep.subr.mxu0 0.0
    %1846 = vmatpush1.msra.mxu0 %v1835
    %1847 = vmatprep.subr.mxu0 0.0
    %1848 = vmatpush1.msra.mxu0 %v1834
    %1849 = vmatprep.subr.mxu0 0.0
    %1850 = vmatpush1.msra.mxu0 %v1833
    %1851 = vmatprep.subr.mxu0 0.0
    %1852 = vmatpush1.msra.mxu0 %v1832
    %1853 = vmatprep.subr.mxu0 0.0
    %1854 = vmatpush1.msra.mxu0 %v1831
    %1855 = vmatprep.subr.mxu0 0.0
    %1856 = vmatpush1.msra.mxu0 %v1830
    %1857 = vmatprep.subr.mxu0 0.0
    %1858 = vmatpush1.msra.mxu0 %v1829
    %1859 = vmatprep.subr.mxu0 0.0
    %1860 = vmatpush1.msra.mxu0 %v1828
    %1861 = vmatprep.subr.mxu0 0.0
    %1862 = vmatpush1.msra.mxu0 %v1827
    %1863 = vmatprep.subr.mxu0 0.0
    %1864 = vmatpush1.msra.mxu0 %v1826
    %1865 = vmatprep.subr.mxu0 0.0
    %1866 = vmatpush1.msra.mxu0 %v1825
    %1867 = vmatprep.subr.mxu0 0.0
    %1868 = vmatpush1.msra.mxu0 %v1824
    %1869 = vmatprep.subr.mxu0 0.0
    %1870 = vmatpush1.msra.mxu0 %v1823
    %1871 = vmatprep.subr.mxu0 0.0
    %1872 = vmatpush2.msra.mxu0 0.0
    %1873 = vmatprep.subr.mxu0 0.0
    %1874 = vmatpush2.msra.mxu0 0.0
    %1875 = vmatprep.subr.mxu0 0.0
    %1876 = vmatpush2.msra.mxu0 0.0
    %1877 = vmatprep.subr.mxu0 0.0
    %1878 = vmatpush2.msra.mxu0 0.0
    %1879 = vmatprep.subr.mxu0 0.0
    %1880 = vmatpush2.msra.mxu0 0.0
    %1881 = vmatprep.subr.mxu0 0.0
    %1882 = vmatpush2.msra.mxu0 0.0
    %1883 = vmatprep.subr.mxu0 0.0
    %1884 = vmatpush2.msra.mxu0 0.0
    %1885 = vmatprep.subr.mxu0 0.0
    %1886 = vmatpush2.msra.mxu0 0.0
    %1887 = vmatprep.subr.mxu0 0.0
    %1888 = vmatpush2.msra.mxu0 0.0
    %1889 = vmatprep.subr.mxu0 0.0
    %1890 = vmatpush2.msra.mxu0 0.0
    %1891 = vmatprep.subr.mxu0 0.0
    %1892 = vmatpush2.msra.mxu0 0.0
    %1893 = vmatprep.subr.mxu0 0.0
    %1894 = vmatpush2.msra.mxu0 0.0
    %1895 = vmatprep.subr.mxu0 0.0
    %1896 = vmatpush2.msra.mxu0 0.0
    %1897 = vmatprep.subr.mxu0 0.0
    %1898 = vmatpush2.msra.mxu0 0.0
    %1899 = vmatprep.subr.mxu0 0.0
    %1900 = vmatpush2.msra.mxu0 0.0
    %1901 = vmatprep.subr.mxu0 0.0
    %1902 = vmatpush2.msra.mxu0 0.0
    %1903 = vmatprep.mubr.f32.mxu0 0.0
    %1904 = vmatmul.mubr.f32.gmra.mxu0 %v1821
    %v1905 = vpop.f32.mrf.mxu0
    %v1906 = vadd.f32 0.0, %v1905
    %v1907 = vpop.f32.mrf.mxu0
    %1908 = vmatprep.mubr.f32.mxu0 0.0
    %1909 = vmatmul.mubr.f32.gmra.mxu0 %v1820
    %v1910 = vpop.f32.mrf.mxu0
    %v1911 = vadd.f32 0.0, %v1910
    %v1912 = vpop.f32.mrf.mxu0
    %1913 = vmatprep.mubr.f32.mxu0 0.0
    %1914 = vmatmul.mubr.f32.gmra.mxu0 %v1819
    %v1915 = vpop.f32.mrf.mxu0
    %v1916 = vadd.f32 0.0, %v1915
    %v1917 = vpop.f32.mrf.mxu0
    %1918 = vmatprep.mubr.f32.mxu0 0.0
    %1919 = vmatmul.mubr.f32.gmra.mxu0 %v1818
    %v1920 = vpop.f32.mrf.mxu0
    %v1921 = vadd.f32 0.0, %v1920
    %v1922 = vpop.f32.mrf.mxu0
    %1923 = vmatprep.mubr.f32.mxu0 0.0
    %1924 = vmatmul.mubr.f32.gmra.mxu0 %v1817
    %v1925 = vpop.f32.mrf.mxu0
    %v1926 = vadd.f32 0.0, %v1925
    %v1927 = vpop.f32.mrf.mxu0
    %1928 = vmatprep.mubr.f32.mxu0 0.0
    %1929 = vmatmul.mubr.f32.gmra.mxu0 %v1816
    %v1930 = vpop.f32.mrf.mxu0
    %v1931 = vadd.f32 0.0, %v1930
    %v1932 = vpop.f32.mrf.mxu0
    %1933 = vmatprep.mubr.f32.mxu0 0.0
    %1934 = vmatmul.mubr.f32.gmra.mxu0 %v1815
    %v1935 = vpop.f32.mrf.mxu0
    %v1936 = vadd.f32 0.0, %v1935
    %v1937 = vpop.f32.mrf.mxu0
    %1938 = vmatprep.mubr.f32.mxu0 0.0
    %1939 = vmatmul.mubr.f32.gmra.mxu0 %v1814
    %v1940 = vpop.f32.mrf.mxu0
    %v1941 = vadd.f32 0.0, %v1940
    %v1942 = vpop.f32.mrf.mxu0
    %1943 = vmatprep.mubr.f32.mxu0 0.0
    %1944 = vmatmul.mubr.f32.gmra.mxu0 %v1813
    %v1945 = vpop.f32.mrf.mxu0
    %v1946 = vadd.f32 0.0, %v1945
    %v1947 = vpop.f32.mrf.mxu0
    %1948 = vdwg.mxu0
    %1949 = vmatprep.subr.mxu0 0.0
    %1950 = vmatpush1.msra.mxu0 %v1803
    %1951 = vmatprep.subr.mxu0 0.0
    %1952 = vmatpush1.msra.mxu0 %v1802
    %1953 = vmatprep.subr.mxu0 0.0
    %1954 = vmatpush1.msra.mxu0 %v1801
    %1955 = vmatprep.subr.mxu0 0.0
    %1956 = vmatpush1.msra.mxu0 %v1800
    %1957 = vmatprep.subr.mxu0 0.0
    %1958 = vmatpush1.msra.mxu0 %v1799
    %1959 = vmatprep.subr.mxu0 0.0
    %1960 = vmatpush1.msra.mxu0 %v1798
    %1961 = vmatprep.subr.mxu0 0.0
    %1962 = vmatpush1.msra.mxu0 %v1797
    %1963 = vmatprep.subr.mxu0 0.0
    %1964 = vmatpush1.msra.mxu0 %v1796
    %1965 = vmatprep.subr.mxu0 0.0
    %1966 = vmatpush1.msra.mxu0 %v1795
    %1967 = vmatprep.subr.mxu0 0.0
    %1968 = vmatpush1.msra.mxu0 %v1794
    %1969 = vmatprep.subr.mxu0 0.0
    %1970 = vmatpush1.msra.mxu0 %v1793
    %1971 = vmatprep.subr.mxu0 0.0
    %1972 = vmatpush1.msra.mxu0 %v1792
    %1973 = vmatprep.subr.mxu0 0.0
    %1974 = vmatpush1.msra.mxu0 %v1791
    %1975 = vmatprep.subr.mxu0 0.0
    %1976 = vmatpush1.msra.mxu0 %v1790
    %1977 = vmatprep.subr.mxu0 0.0
    %1978 = vmatpush1.msra.mxu0 %v1789
    %1979 = vmatprep.subr.mxu0 0.0
    %1980 = vmatpush1.msra.mxu0 %v1788
    %1981 = vmatprep.subr.mxu0 0.0
    %1982 = vmatpush2.msra.mxu0 0.0
    %1983 = vmatprep.subr.mxu0 0.0
    %1984 = vmatpush2.msra.mxu0 0.0
    %1985 = vmatprep.subr.mxu0 0.0
    %1986 = vmatpush2.msra.mxu0 0.0
    %1987 = vmatprep.subr.mxu0 0.0
    %1988 = vmatpush2.msra.mxu0 0.0
    %1989 = vmatprep.subr.mxu0 0.0
    %1990 = vmatpush2.msra.mxu0 0.0
    %1991 = vmatprep.subr.mxu0 0.0
    %1992 = vmatpush2.msra.mxu0 0.0
    %1993 = vmatprep.subr.mxu0 0.0
    %1994 = vmatpush2.msra.mxu0 0.0
    %1995 = vmatprep.subr.mxu0 0.0
    %1996 = vmatpush2.msra.mxu0 0.0
    %1997 = vmatprep.subr.mxu0 0.0
    %1998 = vmatpush2.msra.mxu0 0.0
    %1999 = vmatprep.subr.mxu0 0.0
    %2000 = vmatpush2.msra.mxu0 0.0
    %2001 = vmatprep.subr.mxu0 0.0
    %2002 = vmatpush2.msra.mxu0 0.0
    %2003 = vmatprep.subr.mxu0 0.0
    %2004 = vmatpush2.msra.mxu0 0.0
    %2005 = vmatprep.subr.mxu0 0.0
    %2006 = vmatpush2.msra.mxu0 0.0
    %2007 = vmatprep.subr.mxu0 0.0
    %2008 = vmatpush2.msra.mxu0 0.0
    %2009 = vmatprep.subr.mxu0 0.0
    %2010 = vmatpush2.msra.mxu0 0.0
    %2011 = vmatprep.subr.mxu0 0.0
    %2012 = vmatpush2.msra.mxu0 0.0
    %2013 = vmatprep.mubr.f32.mxu0 0.0
    %2014 = vmatmul.mubr.f32.gmra.mxu0 %v1778
    %v2015 = vpop.f32.mrf.mxu0
    %v2016 = vadd.f32 %v1906, %v2015
    %v2017 = vpop.f32.mrf.mxu0
    %2018 = vmatprep.mubr.f32.mxu0 0.0
    %2019 = vmatmul.mubr.f32.gmra.mxu0 %v1779
    %v2020 = vpop.f32.mrf.mxu0
    %v2021 = vadd.f32 %v1911, %v2020
    %v2022 = vpop.f32.mrf.mxu0
    %2023 = vmatprep.mubr.f32.mxu0 0.0
    %2024 = vmatmul.mubr.f32.gmra.mxu0 %v1780
    %v2025 = vpop.f32.mrf.mxu0
    %v2026 = vadd.f32 %v1916, %v2025
    %v2027 = vpop.f32.mrf.mxu0
    %2028 = vmatprep.mubr.f32.mxu0 0.0
    %2029 = vmatmul.mubr.f32.gmra.mxu0 %v1781
    %v2030 = vpop.f32.mrf.mxu0
    %v2031 = vadd.f32 %v1921, %v2030
    %v2032 = vpop.f32.mrf.mxu0
    %2033 = vmatprep.mubr.f32.mxu0 0.0
    %2034 = vmatmul.mubr.f32.gmra.mxu0 %v1782
    %v2035 = vpop.f32.mrf.mxu0
    %v2036 = vadd.f32 %v1926, %v2035
    %v2037 = vpop.f32.mrf.mxu0
    %2038 = vmatprep.mubr.f32.mxu0 0.0
    %2039 = vmatmul.mubr.f32.gmra.mxu0 %v1783
    %v2040 = vpop.f32.mrf.mxu0
    %v2041 = vadd.f32 %v1931, %v2040
    %v2042 = vpop.f32.mrf.mxu0
    %2043 = vmatprep.mubr.f32.mxu0 0.0
    %2044 = vmatmul.mubr.f32.gmra.mxu0 %v1784
    %v2045 = vpop.f32.mrf.mxu0
    %v2046 = vadd.f32 %v1936, %v2045
    %v2047 = vpop.f32.mrf.mxu0
    %2048 = vmatprep.mubr.f32.mxu0 0.0
    %2049 = vmatmul.mubr.f32.gmra.mxu0 %v1785
    %v2050 = vpop.f32.mrf.mxu0
    %v2051 = vadd.f32 %v1941, %v2050
    %v2052 = vpop.f32.mrf.mxu0
    %2053 = vmatprep.mubr.f32.mxu0 0.0
    %2054 = vmatmul.mubr.f32.gmra.mxu0 %v1786
    %v2055 = vpop.f32.mrf.mxu0
    %v2056 = vadd.f32 %v1946, %v2055
    %v2057 = vpop.f32.mrf.mxu0
    %2058 = vdwg.mxu0
    %v2059 = vrot.slane %v1778, 1
    %v2060 = vrot.slane %v1779, 1
    %v2061 = vrot.slane %v1780, 1
    %v2062 = vrot.slane %v1781, 1
    %v2063 = vrot.slane %v1782, 1
    %v2064 = vrot.slane %v1783, 1
    %v2065 = vrot.slane %v1784, 1
    %v2066 = vrot.slane %v1785, 1
    %v2067 = vrot.slane %v1786, 1
    %v2068 = vsel %vm1597, %v2066, %v2067
    %v2069 = vsel %vm1597, %v2065, %v2066
    %v2070 = vsel %vm1597, %v2064, %v2065
    %v2071 = vsel %vm1597, %v2063, %v2064
    %v2072 = vsel %vm1597, %v2062, %v2063
    %v2073 = vsel %vm1597, %v2061, %v2062
    %v2074 = vsel %vm1597, %v2060, %v2061
    %v2075 = vsel %vm1597, %v2059, %v2060
    %v2076 = vsel %vm1597, %v2067, %v2059
    %s2077 = scalar_lea.vmem [#allocation2], 1152
    %v2078 = vld [vmem:[%s2077] sm:$0xff]
    %v2079 = vld [vmem:[%s2077 + $0x8] sm:$0xff]
    %v2080 = vld [vmem:[%s2077 + $0x10] sm:$0xff]
    %v2081 = vld [vmem:[%s2077 + $0x18] sm:$0xff]
    %v2082 = vld [vmem:[%s2077 + $0x20] sm:$0xff]
    %v2083 = vld [vmem:[%s2077 + $0x28] sm:$0xff]
    %v2084 = vld [vmem:[%s2077 + $0x30] sm:$0xff]
    %v2085 = vld [vmem:[%s2077 + $0x38] sm:$0xff]
    %v2086 = vld [vmem:[%s2077 + $0x40] sm:$0xff]
    %v2087 = vld [vmem:[%s2077 + $0x48] sm:$0xff]
    %v2088 = vld [vmem:[%s2077 + $0x50] sm:$0xff]
    %v2089 = vld [vmem:[%s2077 + $0x58] sm:$0xff]
    %v2090 = vld [vmem:[%s2077 + $0x60] sm:$0xff]
    %v2091 = vld [vmem:[%s2077 + $0x68] sm:$0xff]
    %v2092 = vld [vmem:[%s2077 + $0x70] sm:$0xff]
    %v2093 = vld [vmem:[%s2077 + $0x78] sm:$0xff]
    %2094 = vmatprep.subr.mxu0 0.0
    %2095 = vmatpush1.msra.mxu0 %v2093
    %2096 = vmatprep.subr.mxu0 0.0
    %2097 = vmatpush1.msra.mxu0 %v2092
    %2098 = vmatprep.subr.mxu0 0.0
    %2099 = vmatpush1.msra.mxu0 %v2091
    %2100 = vmatprep.subr.mxu0 0.0
    %2101 = vmatpush1.msra.mxu0 %v2090
    %2102 = vmatprep.subr.mxu0 0.0
    %2103 = vmatpush1.msra.mxu0 %v2089
    %2104 = vmatprep.subr.mxu0 0.0
    %2105 = vmatpush1.msra.mxu0 %v2088
    %2106 = vmatprep.subr.mxu0 0.0
    %2107 = vmatpush1.msra.mxu0 %v2087
    %2108 = vmatprep.subr.mxu0 0.0
    %2109 = vmatpush1.msra.mxu0 %v2086
    %2110 = vmatprep.subr.mxu0 0.0
    %2111 = vmatpush1.msra.mxu0 %v2085
    %2112 = vmatprep.subr.mxu0 0.0
    %2113 = vmatpush1.msra.mxu0 %v2084
    %2114 = vmatprep.subr.mxu0 0.0
    %2115 = vmatpush1.msra.mxu0 %v2083
    %2116 = vmatprep.subr.mxu0 0.0
    %2117 = vmatpush1.msra.mxu0 %v2082
    %2118 = vmatprep.subr.mxu0 0.0
    %2119 = vmatpush1.msra.mxu0 %v2081
    %2120 = vmatprep.subr.mxu0 0.0
    %2121 = vmatpush1.msra.mxu0 %v2080
    %2122 = vmatprep.subr.mxu0 0.0
    %2123 = vmatpush1.msra.mxu0 %v2079
    %2124 = vmatprep.subr.mxu0 0.0
    %2125 = vmatpush1.msra.mxu0 %v2078
    %2126 = vmatprep.subr.mxu0 0.0
    %2127 = vmatpush2.msra.mxu0 0.0
    %2128 = vmatprep.subr.mxu0 0.0
    %2129 = vmatpush2.msra.mxu0 0.0
    %2130 = vmatprep.subr.mxu0 0.0
    %2131 = vmatpush2.msra.mxu0 0.0
    %2132 = vmatprep.subr.mxu0 0.0
    %2133 = vmatpush2.msra.mxu0 0.0
    %2134 = vmatprep.subr.mxu0 0.0
    %2135 = vmatpush2.msra.mxu0 0.0
    %2136 = vmatprep.subr.mxu0 0.0
    %2137 = vmatpush2.msra.mxu0 0.0
    %2138 = vmatprep.subr.mxu0 0.0
    %2139 = vmatpush2.msra.mxu0 0.0
    %2140 = vmatprep.subr.mxu0 0.0
    %2141 = vmatpush2.msra.mxu0 0.0
    %2142 = vmatprep.subr.mxu0 0.0
    %2143 = vmatpush2.msra.mxu0 0.0
    %2144 = vmatprep.subr.mxu0 0.0
    %2145 = vmatpush2.msra.mxu0 0.0
    %2146 = vmatprep.subr.mxu0 0.0
    %2147 = vmatpush2.msra.mxu0 0.0
    %2148 = vmatprep.subr.mxu0 0.0
    %2149 = vmatpush2.msra.mxu0 0.0
    %2150 = vmatprep.subr.mxu0 0.0
    %2151 = vmatpush2.msra.mxu0 0.0
    %2152 = vmatprep.subr.mxu0 0.0
    %2153 = vmatpush2.msra.mxu0 0.0
    %2154 = vmatprep.subr.mxu0 0.0
    %2155 = vmatpush2.msra.mxu0 0.0
    %2156 = vmatprep.subr.mxu0 0.0
    %2157 = vmatpush2.msra.mxu0 0.0
    %2158 = vmatprep.mubr.f32.mxu0 0.0
    %2159 = vmatmul.mubr.f32.gmra.mxu0 %v2075
    %v2160 = vpop.f32.mrf.mxu0
    %v2161 = vadd.f32 0.0, %v2160
    %v2162 = vpop.f32.mrf.mxu0
    %2163 = vmatprep.mubr.f32.mxu0 0.0
    %2164 = vmatmul.mubr.f32.gmra.mxu0 %v2074
    %v2165 = vpop.f32.mrf.mxu0
    %v2166 = vadd.f32 0.0, %v2165
    %v2167 = vpop.f32.mrf.mxu0
    %2168 = vmatprep.mubr.f32.mxu0 0.0
    %2169 = vmatmul.mubr.f32.gmra.mxu0 %v2073
    %v2170 = vpop.f32.mrf.mxu0
    %v2171 = vadd.f32 0.0, %v2170
    %v2172 = vpop.f32.mrf.mxu0
    %2173 = vmatprep.mubr.f32.mxu0 0.0
    %2174 = vmatmul.mubr.f32.gmra.mxu0 %v2072
    %v2175 = vpop.f32.mrf.mxu0
    %v2176 = vadd.f32 0.0, %v2175
    %v2177 = vpop.f32.mrf.mxu0
    %2178 = vmatprep.mubr.f32.mxu0 0.0
    %2179 = vmatmul.mubr.f32.gmra.mxu0 %v2071
    %v2180 = vpop.f32.mrf.mxu0
    %v2181 = vadd.f32 0.0, %v2180
    %v2182 = vpop.f32.mrf.mxu0
    %2183 = vmatprep.mubr.f32.mxu0 0.0
    %2184 = vmatmul.mubr.f32.gmra.mxu0 %v2070
    %v2185 = vpop.f32.mrf.mxu0
    %v2186 = vadd.f32 0.0, %v2185
    %v2187 = vpop.f32.mrf.mxu0
    %2188 = vmatprep.mubr.f32.mxu0 0.0
    %2189 = vmatmul.mubr.f32.gmra.mxu0 %v2069
    %v2190 = vpop.f32.mrf.mxu0
    %v2191 = vadd.f32 0.0, %v2190
    %v2192 = vpop.f32.mrf.mxu0
    %2193 = vmatprep.mubr.f32.mxu0 0.0
    %2194 = vmatmul.mubr.f32.gmra.mxu0 %v2068
    %v2195 = vpop.f32.mrf.mxu0
    %v2196 = vadd.f32 0.0, %v2195
    %v2197 = vpop.f32.mrf.mxu0
    %2198 = vmatprep.mubr.f32.mxu0 0.0
    %2199 = vmatmul.mubr.f32.gmra.mxu0 %v2076
    %v2200 = vpop.f32.mrf.mxu0
    %v2201 = vadd.f32 0.0, %v2200
    %v2202 = vpop.f32.mrf.mxu0
    %2203 = vdwg.mxu0
    %v2204 = vadd.f32 %v2016, %v2161
    %v2205 = vadd.f32 %v2021, %v2166
    %v2206 = vadd.f32 %v2026, %v2171
    %v2207 = vadd.f32 %v2031, %v2176
    %v2208 = vadd.f32 %v2036, %v2181
    %v2209 = vadd.f32 %v2041, %v2186
    %v2210 = vadd.f32 %v2046, %v2191
    %v2211 = vadd.f32 %v2051, %v2196
    %v2212 = vadd.f32 %v2056, %v2201
    %s2213 = scalar_lea.vmem %s3, 5
    %v2214 = vld [vmem:[%s2213] sm:$0x1]
    %v2216 = vlaneseq
    %v2217 = vshrl.u32 %v2216, 7
    %v2218 = vsub.s32 0, %v2217
    %v2219 = vrot.slane %v2214, %v2218
    %v2221 = vadd.f32 %v2204, %v2219
    %v2222 = vadd.f32 %v2205, %v2219
    %v2223 = vadd.f32 %v2206, %v2219
    %v2224 = vadd.f32 %v2207, %v2219
    %v2225 = vadd.f32 %v2208, %v2219
    %v2226 = vadd.f32 %v2209, %v2219
    %v2227 = vadd.f32 %v2210, %v2219
    %v2228 = vadd.f32 %v2211, %v2219
    %v2229 = vadd.f32 %v2212, %v2219
    %vm2230 = vcmask 588800
    %v2232 = vsel %vm2230, %v1162, 0
    %v2235 = vsel %vm2230, %v1163, 0
    %v2238 = vsel %vm2230, %v1164, 0
    %v2241 = vsel %vm2230, %v1165, 0
    %v2244 = vsel %vm2230, %v1166, 0
    %v2247 = vsel %vm2230, %v1167, 0
    %v2250 = vsel %vm2230, %v1168, 0
    %v2253 = vsel %vm2230, %v1169, 0
    %2255 = vmatprep.subr.mxu0 0.0
    %2256 = vmatpush1.msra.mxu0 0.0
    %2257 = vmatprep.subr.mxu0 0.0
    %2258 = vmatpush1.msra.mxu0 0.0
    %2259 = vmatprep.subr.mxu0 0.0
    %2260 = vmatpush1.msra.mxu0 0.0
    %2261 = vmatprep.subr.mxu0 0.0
    %2262 = vmatpush1.msra.mxu0 0.0
    %2263 = vmatprep.subr.mxu0 0.0
    %2264 = vmatpush1.msra.mxu0 0.0
    %2265 = vmatprep.subr.mxu0 0.0
    %2266 = vmatpush1.msra.mxu0 0.0
    %2267 = vmatprep.subr.mxu0 0.0
    %2268 = vmatpush1.msra.mxu0 0.0
    %2269 = vmatprep.subr.mxu0 0.0
    %2270 = vmatpush1.msra.mxu0 %v2229
    %2271 = vmatprep.subr.mxu0 0.0
    %2272 = vmatpush1.msra.mxu0 %v2228
    %2273 = vmatprep.subr.mxu0 0.0
    %2274 = vmatpush1.msra.mxu0 %v2227
    %2275 = vmatprep.subr.mxu0 0.0
    %2276 = vmatpush1.msra.mxu0 %v2226
    %2277 = vmatprep.subr.mxu0 0.0
    %2278 = vmatpush1.msra.mxu0 %v2225
    %2279 = vmatprep.subr.mxu0 0.0
    %2280 = vmatpush1.msra.mxu0 %v2224
    %2281 = vmatprep.subr.mxu0 0.0
    %2282 = vmatpush1.msra.mxu0 %v2223
    %2283 = vmatprep.subr.mxu0 0.0
    %2284 = vmatpush1.msra.mxu0 %v2222
    %2285 = vmatprep.subr.mxu0 0.0
    %2286 = vmatpush1.msra.mxu0 %v2221
    %2287 = vmatprep.subr.mxu0 0.0
    %2288 = vmatpush2.msra.mxu0 0.0
    %2289 = vmatprep.subr.mxu0 0.0
    %2290 = vmatpush2.msra.mxu0 0.0
    %2291 = vmatprep.subr.mxu0 0.0
    %2292 = vmatpush2.msra.mxu0 0.0
    %2293 = vmatprep.subr.mxu0 0.0
    %2294 = vmatpush2.msra.mxu0 0.0
    %2295 = vmatprep.subr.mxu0 0.0
    %2296 = vmatpush2.msra.mxu0 0.0
    %2297 = vmatprep.subr.mxu0 0.0
    %2298 = vmatpush2.msra.mxu0 0.0
    %2299 = vmatprep.subr.mxu0 0.0
    %2300 = vmatpush2.msra.mxu0 0.0
    %2301 = vmatprep.subr.mxu0 0.0
    %2302 = vmatpush2.msra.mxu0 0.0
    %2303 = vmatprep.subr.mxu0 0.0
    %2304 = vmatpush2.msra.mxu0 0.0
    %2305 = vmatprep.subr.mxu0 0.0
    %2306 = vmatpush2.msra.mxu0 0.0
    %2307 = vmatprep.subr.mxu0 0.0
    %2308 = vmatpush2.msra.mxu0 0.0
    %2309 = vmatprep.subr.mxu0 0.0
    %2310 = vmatpush2.msra.mxu0 0.0
    %2311 = vmatprep.subr.mxu0 0.0
    %2312 = vmatpush2.msra.mxu0 0.0
    %2313 = vmatprep.subr.mxu0 0.0
    %2314 = vmatpush2.msra.mxu0 0.0
    %2315 = vmatprep.subr.mxu0 0.0
    %2316 = vmatpush2.msra.mxu0 0.0
    %2317 = vmatprep.subr.mxu0 0.0
    %2318 = vmatpush2.msra.mxu0 0.0
    %2319 = vmatprep.mubr.f32.mxu0 0.0
    %2320 = vmatmul.mubr.f32.gmra.mxu0 %v2232
    %v2321 = vpop.f32.mrf.mxu0
    %v2322 = vadd.f32 0.0, %v2321
    %v2323 = vpop.f32.mrf.mxu0
    %2324 = vmatprep.mubr.f32.mxu0 0.0
    %2325 = vmatmul.mubr.f32.gmra.mxu0 %v2235
    %v2326 = vpop.f32.mrf.mxu0
    %v2327 = vadd.f32 0.0, %v2326
    %v2328 = vpop.f32.mrf.mxu0
    %2329 = vmatprep.mubr.f32.mxu0 0.0
    %2330 = vmatmul.mubr.f32.gmra.mxu0 %v2238
    %v2331 = vpop.f32.mrf.mxu0
    %v2332 = vadd.f32 0.0, %v2331
    %v2333 = vpop.f32.mrf.mxu0
    %2334 = vmatprep.mubr.f32.mxu0 0.0
    %2335 = vmatmul.mubr.f32.gmra.mxu0 %v2241
    %v2336 = vpop.f32.mrf.mxu0
    %v2337 = vadd.f32 0.0, %v2336
    %v2338 = vpop.f32.mrf.mxu0
    %2339 = vmatprep.mubr.f32.mxu0 0.0
    %2340 = vmatmul.mubr.f32.gmra.mxu0 %v2244
    %v2341 = vpop.f32.mrf.mxu0
    %v2342 = vadd.f32 0.0, %v2341
    %v2343 = vpop.f32.mrf.mxu0
    %2344 = vmatprep.mubr.f32.mxu0 0.0
    %2345 = vmatmul.mubr.f32.gmra.mxu0 %v2247
    %v2346 = vpop.f32.mrf.mxu0
    %v2347 = vadd.f32 0.0, %v2346
    %v2348 = vpop.f32.mrf.mxu0
    %2349 = vmatprep.mubr.f32.mxu0 0.0
    %2350 = vmatmul.mubr.f32.gmra.mxu0 %v2250
    %v2351 = vpop.f32.mrf.mxu0
    %v2352 = vadd.f32 0.0, %v2351
    %v2353 = vpop.f32.mrf.mxu0
    %2354 = vmatprep.mubr.f32.mxu0 0.0
    %2355 = vmatmul.mubr.f32.gmra.mxu0 %v2253
    %v2356 = vpop.f32.mrf.mxu0
    %v2357 = vadd.f32 0.0, %v2356
    %v2358 = vpop.f32.mrf.mxu0
    %2359 = vdwg.mxu0
    %s2360 = scalar_lea.vmem [#allocation2], 1280
    %v2361 = vld [vmem:[%s2360] sm:$0xff]
    %v2362 = vld [vmem:[%s2360 + $0x8] sm:$0xff]
    %v2363 = vld [vmem:[%s2360 + $0x10] sm:$0xff]
    %v2364 = vld [vmem:[%s2360 + $0x18] sm:$0xff]
    %v2365 = vld [vmem:[%s2360 + $0x20] sm:$0xff]
    %v2366 = vld [vmem:[%s2360 + $0x28] sm:$0xff]
    %v2367 = vld [vmem:[%s2360 + $0x30] sm:$0xff]
    %v2368 = vld [vmem:[%s2360 + $0x38] sm:$0xff]
    %v2369 = vld [vmem:[%s2360 + $0x40] sm:$0xff]
    %v2370 = vld [vmem:[%s2360 + $0x48] sm:$0xff]
    %v2371 = vld [vmem:[%s2360 + $0x50] sm:$0xff]
    %v2372 = vld [vmem:[%s2360 + $0x58] sm:$0xff]
    %v2373 = vld [vmem:[%s2360 + $0x60] sm:$0xff]
    %v2374 = vld [vmem:[%s2360 + $0x68] sm:$0xff]
    %v2375 = vld [vmem:[%s2360 + $0x70] sm:$0xff]
    %v2376 = vld [vmem:[%s2360 + $0x78] sm:$0xff]
    %s2377 = scalar_lea.vmem [#allocation2], 1408
    %v2378 = vld [vmem:[%s2377] sm:$0xff]
    %v2379 = vld [vmem:[%s2377 + $0x8] sm:$0xff]
    %v2380 = vld [vmem:[%s2377 + $0x10] sm:$0xff]
    %v2381 = vld [vmem:[%s2377 + $0x18] sm:$0xff]
    %v2382 = vld [vmem:[%s2377 + $0x20] sm:$0xff]
    %v2383 = vld [vmem:[%s2377 + $0x28] sm:$0xff]
    %v2384 = vld [vmem:[%s2377 + $0x30] sm:$0xff]
    %v2385 = vld [vmem:[%s2377 + $0x38] sm:$0xff]
    %v2386 = vld [vmem:[%s2377 + $0x40] sm:$0xff]
    %v2387 = vld [vmem:[%s2377 + $0x48] sm:$0xff]
    %v2388 = vld [vmem:[%s2377 + $0x50] sm:$0xff]
    %v2389 = vld [vmem:[%s2377 + $0x58] sm:$0xff]
    %v2390 = vld [vmem:[%s2377 + $0x60] sm:$0xff]
    %v2391 = vld [vmem:[%s2377 + $0x68] sm:$0xff]
    %v2392 = vld [vmem:[%s2377 + $0x70] sm:$0xff]
    %v2393 = vld [vmem:[%s2377 + $0x78] sm:$0xff]
    %2394 = vmatprep.subr.mxu0 0.0
    %2395 = vmatpush1.msra.mxu0 %v2393
    %2396 = vmatprep.subr.mxu0 0.0
    %2397 = vmatpush1.msra.mxu0 %v2392
    %2398 = vmatprep.subr.mxu0 0.0
    %2399 = vmatpush1.msra.mxu0 %v2391
    %2400 = vmatprep.subr.mxu0 0.0
    %2401 = vmatpush1.msra.mxu0 %v2390
    %2402 = vmatprep.subr.mxu0 0.0
    %2403 = vmatpush1.msra.mxu0 %v2389
    %2404 = vmatprep.subr.mxu0 0.0
    %2405 = vmatpush1.msra.mxu0 %v2388
    %2406 = vmatprep.subr.mxu0 0.0
    %2407 = vmatpush1.msra.mxu0 %v2387
    %2408 = vmatprep.subr.mxu0 0.0
    %2409 = vmatpush1.msra.mxu0 %v2386
    %2410 = vmatprep.subr.mxu0 0.0
    %2411 = vmatpush1.msra.mxu0 %v2385
    %2412 = vmatprep.subr.mxu0 0.0
    %2413 = vmatpush1.msra.mxu0 %v2384
    %2414 = vmatprep.subr.mxu0 0.0
    %2415 = vmatpush1.msra.mxu0 %v2383
    %2416 = vmatprep.subr.mxu0 0.0
    %2417 = vmatpush1.msra.mxu0 %v2382
    %2418 = vmatprep.subr.mxu0 0.0
    %2419 = vmatpush1.msra.mxu0 %v2381
    %2420 = vmatprep.subr.mxu0 0.0
    %2421 = vmatpush1.msra.mxu0 %v2380
    %2422 = vmatprep.subr.mxu0 0.0
    %2423 = vmatpush1.msra.mxu0 %v2379
    %2424 = vmatprep.subr.mxu0 0.0
    %2425 = vmatpush1.msra.mxu0 %v2378
    %2426 = vmatprep.subr.mxu0 0.0
    %2427 = vmatpush2.msra.mxu0 0.0
    %2428 = vmatprep.subr.mxu0 0.0
    %2429 = vmatpush2.msra.mxu0 0.0
    %2430 = vmatprep.subr.mxu0 0.0
    %2431 = vmatpush2.msra.mxu0 0.0
    %2432 = vmatprep.subr.mxu0 0.0
    %2433 = vmatpush2.msra.mxu0 0.0
    %2434 = vmatprep.subr.mxu0 0.0
    %2435 = vmatpush2.msra.mxu0 0.0
    %2436 = vmatprep.subr.mxu0 0.0
    %2437 = vmatpush2.msra.mxu0 0.0
    %2438 = vmatprep.subr.mxu0 0.0
    %2439 = vmatpush2.msra.mxu0 0.0
    %2440 = vmatprep.subr.mxu0 0.0
    %2441 = vmatpush2.msra.mxu0 0.0
    %2442 = vmatprep.subr.mxu0 0.0
    %2443 = vmatpush2.msra.mxu0 0.0
    %2444 = vmatprep.subr.mxu0 0.0
    %2445 = vmatpush2.msra.mxu0 0.0
    %2446 = vmatprep.subr.mxu0 0.0
    %2447 = vmatpush2.msra.mxu0 0.0
    %2448 = vmatprep.subr.mxu0 0.0
    %2449 = vmatpush2.msra.mxu0 0.0
    %2450 = vmatprep.subr.mxu0 0.0
    %2451 = vmatpush2.msra.mxu0 0.0
    %2452 = vmatprep.subr.mxu0 0.0
    %2453 = vmatpush2.msra.mxu0 0.0
    %2454 = vmatprep.subr.mxu0 0.0
    %2455 = vmatpush2.msra.mxu0 0.0
    %2456 = vmatprep.subr.mxu0 0.0
    %2457 = vmatpush2.msra.mxu0 0.0
    %2458 = vmatprep.mubr.f32.mxu0 0.0
    %2459 = vmatmul.mubr.f32.gmra.mxu0 %v2322
    %v2460 = vpop.f32.mrf.mxu0
    %v2461 = vadd.f32 0.0, %v2460
    %v2462 = vpop.f32.mrf.mxu0
    %2463 = vmatprep.mubr.f32.mxu0 0.0
    %2464 = vmatmul.mubr.f32.gmra.mxu0 %v2327
    %v2465 = vpop.f32.mrf.mxu0
    %v2466 = vadd.f32 0.0, %v2465
    %v2467 = vpop.f32.mrf.mxu0
    %2468 = vmatprep.mubr.f32.mxu0 0.0
    %2469 = vmatmul.mubr.f32.gmra.mxu0 %v2332
    %v2470 = vpop.f32.mrf.mxu0
    %v2471 = vadd.f32 0.0, %v2470
    %v2472 = vpop.f32.mrf.mxu0
    %2473 = vmatprep.mubr.f32.mxu0 0.0
    %2474 = vmatmul.mubr.f32.gmra.mxu0 %v2337
    %v2475 = vpop.f32.mrf.mxu0
    %v2476 = vadd.f32 0.0, %v2475
    %v2477 = vpop.f32.mrf.mxu0
    %2478 = vmatprep.mubr.f32.mxu0 0.0
    %2479 = vmatmul.mubr.f32.gmra.mxu0 %v2342
    %v2480 = vpop.f32.mrf.mxu0
    %v2481 = vadd.f32 0.0, %v2480
    %v2482 = vpop.f32.mrf.mxu0
    %2483 = vmatprep.mubr.f32.mxu0 0.0
    %2484 = vmatmul.mubr.f32.gmra.mxu0 %v2347
    %v2485 = vpop.f32.mrf.mxu0
    %v2486 = vadd.f32 0.0, %v2485
    %v2487 = vpop.f32.mrf.mxu0
    %2488 = vmatprep.mubr.f32.mxu0 0.0
    %2489 = vmatmul.mubr.f32.gmra.mxu0 %v2352
    %v2490 = vpop.f32.mrf.mxu0
    %v2491 = vadd.f32 0.0, %v2490
    %v2492 = vpop.f32.mrf.mxu0
    %2493 = vmatprep.mubr.f32.mxu0 0.0
    %2494 = vmatmul.mubr.f32.gmra.mxu0 %v2357
    %v2495 = vpop.f32.mrf.mxu0
    %v2496 = vadd.f32 0.0, %v2495
    %v2497 = vpop.f32.mrf.mxu0
    %2498 = vdwg.mxu0
    %2499 = vmatprep.subr.mxu0 0.0
    %2500 = vmatpush1.msra.mxu0 %v2376
    %2501 = vmatprep.subr.mxu0 0.0
    %2502 = vmatpush1.msra.mxu0 %v2375
    %2503 = vmatprep.subr.mxu0 0.0
    %2504 = vmatpush1.msra.mxu0 %v2374
    %2505 = vmatprep.subr.mxu0 0.0
    %2506 = vmatpush1.msra.mxu0 %v2373
    %2507 = vmatprep.subr.mxu0 0.0
    %2508 = vmatpush1.msra.mxu0 %v2372
    %2509 = vmatprep.subr.mxu0 0.0
    %2510 = vmatpush1.msra.mxu0 %v2371
    %2511 = vmatprep.subr.mxu0 0.0
    %2512 = vmatpush1.msra.mxu0 %v2370
    %2513 = vmatprep.subr.mxu0 0.0
    %2514 = vmatpush1.msra.mxu0 %v2369
    %2515 = vmatprep.subr.mxu0 0.0
    %2516 = vmatpush1.msra.mxu0 %v2368
    %2517 = vmatprep.subr.mxu0 0.0
    %2518 = vmatpush1.msra.mxu0 %v2367
    %2519 = vmatprep.subr.mxu0 0.0
    %2520 = vmatpush1.msra.mxu0 %v2366
    %2521 = vmatprep.subr.mxu0 0.0
    %2522 = vmatpush1.msra.mxu0 %v2365
    %2523 = vmatprep.subr.mxu0 0.0
    %2524 = vmatpush1.msra.mxu0 %v2364
    %2525 = vmatprep.subr.mxu0 0.0
    %2526 = vmatpush1.msra.mxu0 %v2363
    %2527 = vmatprep.subr.mxu0 0.0
    %2528 = vmatpush1.msra.mxu0 %v2362
    %2529 = vmatprep.subr.mxu0 0.0
    %2530 = vmatpush1.msra.mxu0 %v2361
    %2531 = vmatprep.subr.mxu0 0.0
    %2532 = vmatpush2.msra.mxu0 0.0
    %2533 = vmatprep.subr.mxu0 0.0
    %2534 = vmatpush2.msra.mxu0 0.0
    %2535 = vmatprep.subr.mxu0 0.0
    %2536 = vmatpush2.msra.mxu0 0.0
    %2537 = vmatprep.subr.mxu0 0.0
    %2538 = vmatpush2.msra.mxu0 0.0
    %2539 = vmatprep.subr.mxu0 0.0
    %2540 = vmatpush2.msra.mxu0 0.0
    %2541 = vmatprep.subr.mxu0 0.0
    %2542 = vmatpush2.msra.mxu0 0.0
    %2543 = vmatprep.subr.mxu0 0.0
    %2544 = vmatpush2.msra.mxu0 0.0
    %2545 = vmatprep.subr.mxu0 0.0
    %2546 = vmatpush2.msra.mxu0 0.0
    %2547 = vmatprep.subr.mxu0 0.0
    %2548 = vmatpush2.msra.mxu0 0.0
    %2549 = vmatprep.subr.mxu0 0.0
    %2550 = vmatpush2.msra.mxu0 0.0
    %2551 = vmatprep.subr.mxu0 0.0
    %2552 = vmatpush2.msra.mxu0 0.0
    %2553 = vmatprep.subr.mxu0 0.0
    %2554 = vmatpush2.msra.mxu0 0.0
    %2555 = vmatprep.subr.mxu0 0.0
    %2556 = vmatpush2.msra.mxu0 0.0
    %2557 = vmatprep.subr.mxu0 0.0
    %2558 = vmatpush2.msra.mxu0 0.0
    %2559 = vmatprep.subr.mxu0 0.0
    %2560 = vmatpush2.msra.mxu0 0.0
    %2561 = vmatprep.subr.mxu0 0.0
    %2562 = vmatpush2.msra.mxu0 0.0
    %2563 = vmatprep.mubr.f32.mxu0 0.0
    %2564 = vmatmul.mubr.f32.gmra.mxu0 %v753
    %v2565 = vpop.f32.mrf.mxu0
    %v2566 = vadd.f32 %v2461, %v2565
    %v2567 = vpop.f32.mrf.mxu0
    %2568 = vmatprep.mubr.f32.mxu0 0.0
    %2569 = vmatmul.mubr.f32.gmra.mxu0 %v758
    %v2570 = vpop.f32.mrf.mxu0
    %v2571 = vadd.f32 %v2466, %v2570
    %v2572 = vpop.f32.mrf.mxu0
    %2573 = vmatprep.mubr.f32.mxu0 0.0
    %2574 = vmatmul.mubr.f32.gmra.mxu0 %v763
    %v2575 = vpop.f32.mrf.mxu0
    %v2576 = vadd.f32 %v2471, %v2575
    %v2577 = vpop.f32.mrf.mxu0
    %2578 = vmatprep.mubr.f32.mxu0 0.0
    %2579 = vmatmul.mubr.f32.gmra.mxu0 %v768
    %v2580 = vpop.f32.mrf.mxu0
    %v2581 = vadd.f32 %v2476, %v2580
    %v2582 = vpop.f32.mrf.mxu0
    %2583 = vmatprep.mubr.f32.mxu0 0.0
    %2584 = vmatmul.mubr.f32.gmra.mxu0 %v773
    %v2585 = vpop.f32.mrf.mxu0
    %v2586 = vadd.f32 %v2481, %v2585
    %v2587 = vpop.f32.mrf.mxu0
    %2588 = vmatprep.mubr.f32.mxu0 0.0
    %2589 = vmatmul.mubr.f32.gmra.mxu0 %v778
    %v2590 = vpop.f32.mrf.mxu0
    %v2591 = vadd.f32 %v2486, %v2590
    %v2592 = vpop.f32.mrf.mxu0
    %2593 = vmatprep.mubr.f32.mxu0 0.0
    %2594 = vmatmul.mubr.f32.gmra.mxu0 %v783
    %v2595 = vpop.f32.mrf.mxu0
    %v2596 = vadd.f32 %v2491, %v2595
    %v2597 = vpop.f32.mrf.mxu0
    %2598 = vmatprep.mubr.f32.mxu0 0.0
    %2599 = vmatmul.mubr.f32.gmra.mxu0 %v788
    %v2600 = vpop.f32.mrf.mxu0
    %v2601 = vadd.f32 %v2496, %v2600
    %v2602 = vpop.f32.mrf.mxu0
    %2603 = vdwg.mxu0
    %s2604 = scalar_lea.vmem %s3, 6
    %v2605 = vld [vmem:[%s2604] sm:$0x1]
    %v2607 = vlaneseq
    %v2608 = vshrl.u32 %v2607, 7
    %v2609 = vsub.s32 0, %v2608
    %v2610 = vrot.slane %v2605, %v2609
    %v2612 = vadd.f32 %v2566, %v2610
    %v2613 = vadd.f32 %v2571, %v2610
    %v2614 = vadd.f32 %v2576, %v2610
    %v2615 = vadd.f32 %v2581, %v2610
    %v2616 = vadd.f32 %v2586, %v2610
    %v2617 = vadd.f32 %v2591, %v2610
    %v2618 = vadd.f32 %v2596, %v2610
    %v2619 = vadd.f32 %v2601, %v2610
    %2620 = vst [vmem:[%s4] sm:$0xff] %v2612
    %2621 = vst [vmem:[%s4 + $0x8] sm:$0xff] %v2613
    %2622 = vst [vmem:[%s4 + $0x10] sm:$0xff] %v2614
    %2623 = vst [vmem:[%s4 + $0x18] sm:$0xff] %v2615
    %2624 = vst [vmem:[%s4 + $0x20] sm:$0xff] %v2616
    %2625 = vst [vmem:[%s4 + $0x28] sm:$0xff] %v2617
    %2626 = vst [vmem:[%s4 + $0x30] sm:$0xff] %v2618
    %2627 = vst [vmem:[%s4 + $0x38] sm:$0xff] %v2619
    // Predicated region
    $region22: #{nlgnn_forward.1} parent=1 // pred_check
      _
    $region23: #{nlgnn_forward.1} parent=1 // pred_check_branch
      %2629 = sbr.rel (0) target = $region25
    $region24: #{nlgnn_forward.1} parent=1 // pred_region
      _
    $region25: #{nlgnn_forward.1} parent=1 // pred_fallthru
      _
    // Predicated region
    $region26: #{nlgnn_forward.1} parent=1 // pred_check
      _
    $region27: #{nlgnn_forward.1} parent=1 // pred_check_branch
      %2631 = sbr.rel (0) target = $region29
    $region28: #{nlgnn_forward.1} parent=1 // pred_region
      _
    $region29: #{nlgnn_forward.1} parent=1 // pred_fallthru
      _
    %2632 = vsyncpa [#allocation3], 1

</llo_original>
